<compile_context>
chip_gen: v7x
topology: tpu7x:2x2x1
jax: 0.10.0
libtpu: 0.0.40
codegen_flags: <defaults>
</compile_context>

<pallas_src>
import jax
import jax.numpy as jnp
from jax.experimental import pallas as pl
from jax.experimental.pallas import tpu as pltpu

IN_FEATURES = 1024
H1, H2, H3 = 512, 256, 256


def _compression_mlp_kernel(
    x_ref,
    w1_ref, b1_ref,
    w2_ref, b2_ref,
    w3_ref, b3_ref,
    w4_ref, b4_ref,
    o_ref,
):
    wdt = w1_ref.dtype  # compute dtype of the matmul inputs (f32 or bf16)

    # Layer 1: (tb, 1024) @ (1024, 512) -> (tb, 512), bias, ReLU
    h = jnp.dot(x_ref[...].astype(wdt), w1_ref[...],
                preferred_element_type=jnp.float32) + b1_ref[...]
    h = jnp.maximum(h, 0.0)

    # Layer 2: (tb, 512) @ (512, 256) -> (tb, 256), bias, ReLU
    h = jnp.dot(h.astype(wdt), w2_ref[...],
                preferred_element_type=jnp.float32) + b2_ref[...]
    h = jnp.maximum(h, 0.0)

    # Layer 3: (tb, 256) @ (256, 256) -> (tb, 256), bias, ReLU
    h = jnp.dot(h.astype(wdt), w3_ref[...],
                preferred_element_type=jnp.float32) + b3_ref[...]
    h = jnp.maximum(h, 0.0)

    # Layer 4: (tb, 256) @ (256, z) -> (tb, z), bias, Tanh (EUP)
    h = jnp.dot(h.astype(wdt), w4_ref[...],
                preferred_element_type=jnp.float32) + b4_ref[...]
    o_ref[...] = jnp.tanh(h).astype(o_ref.dtype)


def prepare_params(w1, b1, w2, b2, w3, b3, w4, b4, *, use_bf16=False):
    """One-time parameter prep (outside the forward path).

    Takes PyTorch nn.Linear layouts (wi: (out, in), bi: (out,)) and returns
    weights pre-transposed to (in, out) so the kernel contracts on the
    sublane dim with no per-call relayout. Optionally casts weights to bf16
    (biases stay f32; the MXU accumulates in f32 regardless).
    """
    wdt = jnp.bfloat16 if use_bf16 else jnp.float32
    return (
        jnp.asarray(w1.T, dtype=wdt), jnp.asarray(b1, jnp.float32).reshape(1, -1),
        jnp.asarray(w2.T, dtype=wdt), jnp.asarray(b2, jnp.float32).reshape(1, -1),
        jnp.asarray(w3.T, dtype=wdt), jnp.asarray(b3, jnp.float32).reshape(1, -1),
        jnp.asarray(w4.T, dtype=wdt), jnp.asarray(b4, jnp.float32).reshape(1, -1),
    )


def compression_mlp(x_nchw, prepared_params, *, block_b=256):
    """x_nchw: (b, C, H, W) with C*H*W == 1024.
    prepared_params: output of prepare_params (weights (in, out), biases (1, out)).
    Returns (b, z)."""
    b = x_nchw.shape[0]
    x2d = x_nchw.reshape(b, IN_FEATURES)  # same semantics as torch .view(b, 1024)
    w1t, b1, w2t, b2, w3t, b3, w4t, b4 = prepared_params
    z = w4t.shape[1]

    # Batch tile: whole batch if small, otherwise block_b-row tiles (mult of 8).
    if b <= block_b:
        tb, bp = b, b
        x_pad = x2d
    else:
        tb = block_b
        bp = pl.cdiv(b, tb) * tb
        x_pad = jnp.pad(x2d, ((0, bp - b), (0, 0))) if bp != b else x2d
    grid = (bp // tb,)

    wbytes = w1t.dtype.itemsize
    flops = 2 * b * (IN_FEATURES * H1 + H1 * H2 + H2 * H3 + H3 * z)
    bytes_accessed = (
        4 * (b * IN_FEATURES + H1 + H2 + H3 + z + b * z)
        + wbytes * (IN_FEATURES * H1 + H1 * H2 + H2 * H3 + H3 * z)
    )
    cost = pl.CostEstimate(
        flops=flops, transcendentals=b * z, bytes_accessed=bytes_accessed
    )

    # Weights/biases: full-shape blocks with constant index_map -> DMA'd once,
    # VMEM-resident across all batch-grid steps.
    def const_spec(shape):
        return pl.BlockSpec(shape, lambda i: (0, 0))

    out = pl.pallas_call(
        _compression_mlp_kernel,
        out_shape=jax.ShapeDtypeStruct((bp, z), x2d.dtype),
        grid=grid,
        in_specs=[
            pl.BlockSpec((tb, IN_FEATURES), lambda i: (i, 0)),
            const_spec(w1t.shape), const_spec(b1.shape),
            const_spec(w2t.shape), const_spec(b2.shape),
            const_spec(w3t.shape), const_spec(b3.shape),
            const_spec(w4t.shape), const_spec(b4.shape),
        ],
        out_specs=pl.BlockSpec((tb, z), lambda i: (i, 0)),
        compiler_params=pltpu.CompilerParams(
            dimension_semantics=("parallel",),
        ),
        cost_estimate=cost,
    )(x_pad, w1t, b1, w2t, b2, w3t, b3, w4t, b4)

    return out[:b] if bp != b else out


if __name__ == "__main__":
    key = jax.random.PRNGKey(0)
    keys = jax.random.split(key, 9)

    # Shapes consistent with the module: x.view(b, 1024) -> NCHW with C*H*W = 1024.
    b, C, H, W = 2, 4, 16, 16
    z = 32

    x = jax.random.normal(keys[0], (b, C, H, W), dtype=jnp.float32)

    # Deterministic nn.Linear default init: U(-1/sqrt(fan_in), 1/sqrt(fan_in)).
    def linear_init(kw, kb, out_f, in_f):
        bound = 1.0 / (in_f ** 0.5)
        w = jax.random.uniform(kw, (out_f, in_f), jnp.float32, -bound, bound)
        bia = jax.random.uniform(kb, (out_f,), jnp.float32, -bound, bound)
        return w, bia

    w1, b1 = linear_init(keys[1], keys[2], H1, IN_FEATURES)
    w2, b2 = linear_init(keys[3], keys[4], H2, H1)
    w3, b3 = linear_init(keys[5], keys[6], H3, H2)
    w4, b4 = linear_init(keys[7], keys[8], z, H3)

    # One-time parameter prep (pre-transposed weights; f32 to match PyTorch).
    params = prepare_params(w1, b1, w2, b2, w3, b3, w4, b4, use_bf16=False)

    # Pure-JAX reference of the PyTorch forward.
    def ref_fwd(xx):
        h = xx.reshape(xx.shape[0], IN_FEATURES)
        h = jnp.maximum(h @ w1.T + b1, 0.0)
        h = jnp.maximum(h @ w2.T + b2, 0.0)
        h = jnp.maximum(h @ w3.T + b3, 0.0)
        return jnp.tanh(h @ w4.T + b4)

    # Case 1: tiny batch (single tile).
    out = jax.block_until_ready(compression_mlp(x, params))
    ref = ref_fwd(x)
    assert out.shape == (b, z)
    assert jnp.allclose(out, ref, atol=1e-4, rtol=1e-4)

    # Case 2: exercise the batch grid (grid=(2,)) with weight-resident blocks.
    b2_ = 16
    x_big = jax.random.normal(jax.random.PRNGKey(1), (b2_, C, H, W), jnp.float32)
    out_big = jax.block_until_ready(compression_mlp(x_big, params, block_b=8))
    assert out_big.shape == (b2_, z)
    assert jnp.allclose(out_big, ref_fwd(x_big), atol=1e-4, rtol=1e-4)

    print("KERNEL_OK")
</pallas_src>

<mosaic_0001>
module attributes {stable_mosaic.version = 11 : i64} {
  func.func @_compression_mlp_kernel(%arg0: i32, %arg1: memref<2x1024xf32, #tpu.memory_space<vmem>>, %arg2: memref<1024x512xf32, #tpu.memory_space<vmem>>, %arg3: memref<1x512xf32, #tpu.memory_space<vmem>>, %arg4: memref<512x256xf32, #tpu.memory_space<vmem>>, %arg5: memref<1x256xf32, #tpu.memory_space<vmem>>, %arg6: memref<256x256xf32, #tpu.memory_space<vmem>>, %arg7: memref<1x256xf32, #tpu.memory_space<vmem>>, %arg8: memref<256x32xf32, #tpu.memory_space<vmem>>, %arg9: memref<1x32xf32, #tpu.memory_space<vmem>>, %arg10: memref<2x32xf32, #tpu.memory_space<vmem>>) attributes {dimension_semantics = [#tpu.dimension_semantics<parallel>], iteration_bounds = array<i64: 1>, scalar_prefetch = 0 : i64, scratch_operands = 0 : i64, tpu.core_type = #tpu.core_type<tc>, window_params = [{transform_indices = @transform_0, window_bounds = array<i64: 2, 1024>}, {pipeline_mode = #tpu.pipeline_mode<synchronous>, transform_indices = @transform_1, window_bounds = array<i64: 1024, 512>}, {pipeline_mode = #tpu.pipeline_mode<synchronous>, transform_indices = @transform_2, window_bounds = array<i64: 1, 512>}, {pipeline_mode = #tpu.pipeline_mode<synchronous>, transform_indices = @transform_3, window_bounds = array<i64: 512, 256>}, {pipeline_mode = #tpu.pipeline_mode<synchronous>, transform_indices = @transform_4, window_bounds = array<i64: 1, 256>}, {pipeline_mode = #tpu.pipeline_mode<synchronous>, transform_indices = @transform_5, window_bounds = array<i64: 256, 256>}, {pipeline_mode = #tpu.pipeline_mode<synchronous>, transform_indices = @transform_6, window_bounds = array<i64: 1, 256>}, {pipeline_mode = #tpu.pipeline_mode<synchronous>, transform_indices = @transform_7, window_bounds = array<i64: 256, 32>}, {pipeline_mode = #tpu.pipeline_mode<synchronous>, transform_indices = @transform_8, window_bounds = array<i64: 1, 32>}, {transform_indices = @transform_9, window_bounds = array<i64: 2, 32>}]} {
    %c0 = arith.constant 0 : index
    %c0_0 = arith.constant 0 : index
    %0 = vector.load %arg1[%c0, %c0_0] : memref<2x1024xf32, #tpu.memory_space<vmem>>, vector<2x1024xf32>
    %c0_1 = arith.constant 0 : index
    %c0_2 = arith.constant 0 : index
    %1 = vector.load %arg2[%c0_1, %c0_2] : memref<1024x512xf32, #tpu.memory_space<vmem>>, vector<1024x512xf32>
    %cst = arith.constant dense<0.000000e+00> : vector<2x512xf32>
    %2 = tpu.matmul %0, %1, %cst {dimension_numbers = #tpu.dot_dimension_numbers<[1], [0], [0], [1], [0, 0, 1, 1], [], []>} : vector<2x1024xf32>, vector<1024x512xf32>, vector<2x512xf32> -> vector<2x512xf32>
    %c0_3 = arith.constant 0 : index
    %c0_4 = arith.constant 0 : index
    %3 = vector.load %arg3[%c0_3, %c0_4] : memref<1x512xf32, #tpu.memory_space<vmem>>, vector<1x512xf32>
    %4 = vector.broadcast %3 : vector<1x512xf32> to vector<2x512xf32>
    %5 = arith.addf %2, %4 : vector<2x512xf32>
    %cst_5 = arith.constant 0.000000e+00 : f32
    %6 = vector.broadcast %cst_5 : f32 to vector<2x512xf32>
    %7 = arith.maximumf %5, %6 : vector<2x512xf32>
    %c0_6 = arith.constant 0 : index
    %c0_7 = arith.constant 0 : index
    %8 = vector.load %arg4[%c0_6, %c0_7] : memref<512x256xf32, #tpu.memory_space<vmem>>, vector<512x256xf32>
    %cst_8 = arith.constant dense<0.000000e+00> : vector<2x256xf32>
    %9 = tpu.matmul %7, %8, %cst_8 {dimension_numbers = #tpu.dot_dimension_numbers<[1], [0], [0], [1], [0, 0, 1, 1], [], []>} : vector<2x512xf32>, vector<512x256xf32>, vector<2x256xf32> -> vector<2x256xf32>
    %c0_9 = arith.constant 0 : index
    %c0_10 = arith.constant 0 : index
    %10 = vector.load %arg5[%c0_9, %c0_10] : memref<1x256xf32, #tpu.memory_space<vmem>>, vector<1x256xf32>
    %11 = vector.broadcast %10 : vector<1x256xf32> to vector<2x256xf32>
    %12 = arith.addf %9, %11 : vector<2x256xf32>
    %cst_11 = arith.constant 0.000000e+00 : f32
    %13 = vector.broadcast %cst_11 : f32 to vector<2x256xf32>
    %14 = arith.maximumf %12, %13 : vector<2x256xf32>
    %c0_12 = arith.constant 0 : index
    %c0_13 = arith.constant 0 : index
    %15 = vector.load %arg6[%c0_12, %c0_13] : memref<256x256xf32, #tpu.memory_space<vmem>>, vector<256x256xf32>
    %cst_14 = arith.constant dense<0.000000e+00> : vector<2x256xf32>
    %16 = tpu.matmul %14, %15, %cst_14 {dimension_numbers = #tpu.dot_dimension_numbers<[1], [0], [0], [1], [0, 0, 1, 1], [], []>} : vector<2x256xf32>, vector<256x256xf32>, vector<2x256xf32> -> vector<2x256xf32>
    %c0_15 = arith.constant 0 : index
    %c0_16 = arith.constant 0 : index
    %17 = vector.load %arg7[%c0_15, %c0_16] : memref<1x256xf32, #tpu.memory_space<vmem>>, vector<1x256xf32>
    %18 = vector.broadcast %17 : vector<1x256xf32> to vector<2x256xf32>
    %19 = arith.addf %16, %18 : vector<2x256xf32>
    %cst_17 = arith.constant 0.000000e+00 : f32
    %20 = vector.broadcast %cst_17 : f32 to vector<2x256xf32>
    %21 = arith.maximumf %19, %20 : vector<2x256xf32>
    %c0_18 = arith.constant 0 : index
    %c0_19 = arith.constant 0 : index
    %22 = vector.load %arg8[%c0_18, %c0_19] : memref<256x32xf32, #tpu.memory_space<vmem>>, vector<256x32xf32>
    %cst_20 = arith.constant dense<0.000000e+00> : vector<2x32xf32>
    %23 = tpu.matmul %21, %22, %cst_20 {dimension_numbers = #tpu.dot_dimension_numbers<[1], [0], [0], [1], [0, 0, 1, 1], [], []>} : vector<2x256xf32>, vector<256x32xf32>, vector<2x32xf32> -> vector<2x32xf32>
    %c0_21 = arith.constant 0 : index
    %c0_22 = arith.constant 0 : index
    %24 = vector.load %arg9[%c0_21, %c0_22] : memref<1x32xf32, #tpu.memory_space<vmem>>, vector<1x32xf32>
    %25 = vector.broadcast %24 : vector<1x32xf32> to vector<2x32xf32>
    %26 = arith.addf %23, %25 : vector<2x32xf32>
    %27 = math.tanh %26 : vector<2x32xf32>
    %c0_23 = arith.constant 0 : index
    %c0_24 = arith.constant 0 : index
    %28 = vector.load %arg10[%c0_23, %c0_24] : memref<2x32xf32, #tpu.memory_space<vmem>>, vector<2x32xf32>
    tpu.vector_store %arg10[%c0_23, %c0_24], %27 {strides = array<i32>} : memref<2x32xf32, #tpu.memory_space<vmem>>, vector<2x32xf32>,
    return
  }
  func.func @transform_0(%arg0: i32) -> (i32, i32) {
    %c0_i32 = arith.constant 0 : i32
    %c0_i32_0 = arith.constant 0 : i32
    return %arg0, %c0_i32 : i32, i32
  }
  func.func @transform_1(%arg0: i32) -> (i32, i32) {
    %c0_i32 = arith.constant 0 : i32
    %c0_i32_0 = arith.constant 0 : i32
    %c0_i32_1 = arith.constant 0 : i32
    return %c0_i32, %c0_i32_0 : i32, i32
  }
  func.func @transform_2(%arg0: i32) -> (i32, i32) {
    %c0_i32 = arith.constant 0 : i32
    %c0_i32_0 = arith.constant 0 : i32
    %c0_i32_1 = arith.constant 0 : i32
    return %c0_i32, %c0_i32_0 : i32, i32
  }
  func.func @transform_3(%arg0: i32) -> (i32, i32) {
    %c0_i32 = arith.constant 0 : i32
    %c0_i32_0 = arith.constant 0 : i32
    %c0_i32_1 = arith.constant 0 : i32
    return %c0_i32, %c0_i32_0 : i32, i32
  }
  func.func @transform_4(%arg0: i32) -> (i32, i32) {
    %c0_i32 = arith.constant 0 : i32
    %c0_i32_0 = arith.constant 0 : i32
    %c0_i32_1 = arith.constant 0 : i32
    return %c0_i32, %c0_i32_0 : i32, i32
  }
  func.func @transform_5(%arg0: i32) -> (i32, i32) {
    %c0_i32 = arith.constant 0 : i32
    %c0_i32_0 = arith.constant 0 : i32
    %c0_i32_1 = arith.constant 0 : i32
    return %c0_i32, %c0_i32_0 : i32, i32
  }
  func.func @transform_6(%arg0: i32) -> (i32, i32) {
    %c0_i32 = arith.constant 0 : i32
    %c0_i32_0 = arith.constant 0 : i32
    %c0_i32_1 = arith.constant 0 : i32
    return %c0_i32, %c0_i32_0 : i32, i32
  }
  func.func @transform_7(%arg0: i32) -> (i32, i32) {
    %c0_i32 = arith.constant 0 : i32
    %c0_i32_0 = arith.constant 0 : i32
    %c0_i32_1 = arith.constant 0 : i32
    return %c0_i32, %c0_i32_0 : i32, i32
  }
  func.func @transform_8(%arg0: i32) -> (i32, i32) {
    %c0_i32 = arith.constant 0 : i32
    %c0_i32_0 = arith.constant 0 : i32
    %c0_i32_1 = arith.constant 0 : i32
    return %c0_i32, %c0_i32_0 : i32, i32
  }
  func.func @transform_9(%arg0: i32) -> (i32, i32) {
    %c0_i32 = arith.constant 0 : i32
    %c0_i32_0 = arith.constant 0 : i32
    return %arg0, %c0_i32 : i32, i32
  }
}

</mosaic_0001>

<llo_original>
// kernel: tpu_custom_call.1
$region0: #{tpu_custom_call.1}
  #allocation0 [shape = 'u32[]', space=smem, size = 0x4, offset = 0x4, fixed_abs, tag = 'smem constant byte address 0x4 - core index']
  #allocation1 [shape = 'u32[144,128]{1,0:T(1,128)}', space=vmem, size = 0x12000, scoped, tag = 'internal scratch']
  %s0 = inlined_call_operand.hbm [shape: f32[2,1024], index: 0, kind: input, shape index: {}]
  %s1 = inlined_call_operand.hbm [shape: f32[1024,512], index: 1, kind: input, shape index: {}]
  %s2 = inlined_call_operand.hbm [shape: f32[1,512], index: 2, kind: input, shape index: {}]
  %s3 = inlined_call_operand.hbm [shape: f32[512,256], index: 3, kind: input, shape index: {}]
  %s4 = inlined_call_operand.hbm [shape: f32[1,256], index: 4, kind: input, shape index: {}]
  %s5 = inlined_call_operand.hbm [shape: f32[256,256], index: 5, kind: input, shape index: {}]
  %s6 = inlined_call_operand.hbm [shape: f32[1,256], index: 6, kind: input, shape index: {}]
  %s7 = inlined_call_operand.vmem [shape: f32[256,32], index: 7, kind: input, shape index: {}]
  %s8 = inlined_call_operand.hbm [shape: f32[1,32], index: 8, kind: input, shape index: {}]
  %s9 = inlined_call_operand.hbm [shape: f32[2,32], index: 9, kind: output, shape index: {}]
  %s10 = sld [smem:[#allocation0]]
  $region78: #{tpu_custom_call.1} parent=0
    _
  %s12 = ssub.s32 1, %s10
  %s13 = scalar_select 0, %s12, %s10
  $region1: #{tpu_custom_call.1} parent=0
    #allocation2 [shape = 'u8[8192]{0}', space=vmem, size = 0x2000, scoped, tag = 'input window, operand 0, single buffered']
    #allocation3 [shape = 's32[1]{0}', space=sflag, size = 0x4, scoped, tag = 'scoped memory for tpu_custom_call.1']
    #allocation4 [shape = 's32[1]{0}', space=sflag, size = 0x4, scoped, tag = 'scoped memory for tpu_custom_call.1']
    #allocation5 [shape = 'u8[2097152]{0}', space=vmem, size = 0x200000, scoped, tag = 'input window, operand 1, single buffered']
    #allocation6 [shape = 's32[1]{0}', space=sflag, size = 0x4, scoped, tag = 'scoped memory for tpu_custom_call.1']
    #allocation7 [shape = 'u8[2048]{0}', space=vmem, size = 0x800, scoped, tag = 'input window, operand 2, single buffered']
    #allocation8 [shape = 'u8[524288]{0}', space=vmem, size = 0x80000, scoped, tag = 'input window, operand 3, single buffered']
    #allocation9 [shape = 's32[1]{0}', space=sflag, size = 0x4, scoped, tag = 'scoped memory for tpu_custom_call.1']
    #allocation10 [shape = 'u8[1024]{0}', space=vmem, size = 0x400, scoped, tag = 'input window, operand 4, single buffered']
    #allocation11 [shape = 'u8[262144]{0}', space=vmem, size = 0x40000, scoped, tag = 'input window, operand 5, single buffered']
    #allocation12 [shape = 's32[1]{0}', space=sflag, size = 0x4, scoped, tag = 'scoped memory for tpu_custom_call.1']
    #allocation13 [shape = 'u8[1024]{0}', space=vmem, size = 0x400, scoped, tag = 'input window, operand 6, single buffered']
    #allocation14 [shape = 'u8[512]{0}', space=vmem, size = 0x400, scoped, tag = 'input window, operand 8, single buffered']
    #allocation15 [shape = 's32[1]{0}', space=sflag, size = 0x4, scoped, tag = 'scoped memory for tpu_custom_call.1']
    #allocation16 [shape = 'u8[1024]{0}', space=vmem, size = 0x400, scoped, tag = 'output window, operand 0, single buffered']
    %14 = vsyncpa [#allocation3], 0
    %15 = vsyncpa [#allocation6], 0
    %16 = vsyncpa [#allocation9], 0
    %17 = vsyncpa [#allocation12], 0
    %18 = vsyncpa [#allocation15], 0
    %19 = vsyncpa [#allocation4], 0
    // Predicated region
    $region2: #{tpu_custom_call.1} parent=1 // pred_check
      _
    $region3: #{tpu_custom_call.1} parent=1 // pred_check_branch
      %21 = sbr.rel (0) target = $region5
    $region4: #{tpu_custom_call.1} parent=1 // pred_region
      %s23 = ssub.s32 256, 256
      %24 = vsyncadd [#allocation3], %s23
      %s26 = sshll.u32 [#allocation2], 4
      %s27 = int_to_ptr.vmem [resolvable:$true] %s26
      %29 = dma.hbm_to_vmem [thread:$0]  %s0, 256, %s27, [#allocation3]
    $region5: #{tpu_custom_call.1} parent=1 // pred_fallthru
      _
    // Predicated region
    $region6: #{tpu_custom_call.1} parent=1 // pred_check
      _
    $region7: #{tpu_custom_call.1} parent=1 // pred_check_branch
      %31 = sbr.rel (0) target = $region9
    $region8: #{tpu_custom_call.1} parent=1 // pred_region
      %s33 = ssub.s32 65536, 65536
      %34 = vsyncadd [#allocation6], %s33
      %s35 = sshll.u32 [#allocation5], 4
      %s36 = int_to_ptr.vmem [resolvable:$true] %s35
      %41 = dma.hbm_to_vmem [thread:$0]  %s1, 65536, %s36, [#allocation6], 512, 512, 32
    $region9: #{tpu_custom_call.1} parent=1 // pred_fallthru
      _
    // Predicated region
    $region10: #{tpu_custom_call.1} parent=1 // pred_check
      _
    $region11: #{tpu_custom_call.1} parent=1 // pred_check_branch
      %43 = sbr.rel (0) target = $region13
    $region12: #{tpu_custom_call.1} parent=1 // pred_region
      %s45 = ssub.s32 64, 64
      %46 = vsyncadd [#allocation6], %s45
      %s48 = sshll.u32 [#allocation7], 4
      %s49 = int_to_ptr.vmem [resolvable:$true] %s48
      %51 = dma.hbm_to_vmem [thread:$0]  %s2, 64, %s49, [#allocation6]
    $region13: #{tpu_custom_call.1} parent=1 // pred_fallthru
      _
    // Predicated region
    $region14: #{tpu_custom_call.1} parent=1 // pred_check
      _
    $region15: #{tpu_custom_call.1} parent=1 // pred_check_branch
      %53 = sbr.rel (0) target = $region17
    $region16: #{tpu_custom_call.1} parent=1 // pred_region
      %s55 = ssub.s32 16384, 16384
      %56 = vsyncadd [#allocation9], %s55
      %s57 = sshll.u32 [#allocation8], 4
      %s58 = int_to_ptr.vmem [resolvable:$true] %s57
      %63 = dma.hbm_to_vmem [thread:$0]  %s3, 16384, %s58, [#allocation9], 256, 256, 16
    $region17: #{tpu_custom_call.1} parent=1 // pred_fallthru
      _
    // Predicated region
    $region18: #{tpu_custom_call.1} parent=1 // pred_check
      _
    $region19: #{tpu_custom_call.1} parent=1 // pred_check_branch
      %65 = sbr.rel (0) target = $region21
    $region20: #{tpu_custom_call.1} parent=1 // pred_region
      %s67 = ssub.s32 32, 32
      %68 = vsyncadd [#allocation9], %s67
      %s70 = sshll.u32 [#allocation10], 4
      %s71 = int_to_ptr.vmem [resolvable:$true] %s70
      %73 = dma.hbm_to_vmem [thread:$0]  %s4, 32, %s71, [#allocation9]
    $region21: #{tpu_custom_call.1} parent=1 // pred_fallthru
      _
    // Predicated region
    $region22: #{tpu_custom_call.1} parent=1 // pred_check
      _
    $region23: #{tpu_custom_call.1} parent=1 // pred_check_branch
      %75 = sbr.rel (0) target = $region25
    $region24: #{tpu_custom_call.1} parent=1 // pred_region
      %s77 = ssub.s32 8192, 8192
      %78 = vsyncadd [#allocation12], %s77
      %s79 = sshll.u32 [#allocation11], 4
      %s80 = int_to_ptr.vmem [resolvable:$true] %s79
      %85 = dma.hbm_to_vmem [thread:$0]  %s5, 8192, %s80, [#allocation12], 256, 256, 16
    $region25: #{tpu_custom_call.1} parent=1 // pred_fallthru
      _
    // Predicated region
    $region26: #{tpu_custom_call.1} parent=1 // pred_check
      _
    $region27: #{tpu_custom_call.1} parent=1 // pred_check_branch
      %87 = sbr.rel (0) target = $region29
    $region28: #{tpu_custom_call.1} parent=1 // pred_region
      %s89 = ssub.s32 32, 32
      %90 = vsyncadd [#allocation12], %s89
      %s92 = sshll.u32 [#allocation13], 4
      %s93 = int_to_ptr.vmem [resolvable:$true] %s92
      %95 = dma.hbm_to_vmem [thread:$0]  %s6, 32, %s93, [#allocation12]
    $region29: #{tpu_custom_call.1} parent=1 // pred_fallthru
      _
    // Predicated region
    $region30: #{tpu_custom_call.1} parent=1 // pred_check
      _
    $region31: #{tpu_custom_call.1} parent=1 // pred_check_branch
      %97 = sbr.rel (0) target = $region33
    $region32: #{tpu_custom_call.1} parent=1 // pred_region
      _
    $region33: #{tpu_custom_call.1} parent=1 // pred_fallthru
      _
    // Predicated region
    $region34: #{tpu_custom_call.1} parent=1 // pred_check
      _
    $region35: #{tpu_custom_call.1} parent=1 // pred_check_branch
      %99 = sbr.rel (0) target = $region37
    $region36: #{tpu_custom_call.1} parent=1 // pred_region
      %s101 = ssub.s32 16, 16
      %102 = vsyncadd [#allocation15], %s101
      %s104 = sshll.u32 [#allocation14], 4
      %s105 = int_to_ptr.vmem [resolvable:$true] %s104
      %107 = dma.hbm_to_vmem [thread:$0]  %s8, 16, %s105, [#allocation15]
    $region37: #{tpu_custom_call.1} parent=1 // pred_fallthru
      _
    // Predicated region
    $region38: #{tpu_custom_call.1} parent=1 // pred_check
      _
    $region39: #{tpu_custom_call.1} parent=1 // pred_check_branch
      %109 = sbr.rel (0) target = $region41
    $region40: #{tpu_custom_call.1} parent=1 // pred_region
      %110 = dma.done [#allocation3], 256
    $region41: #{tpu_custom_call.1} parent=1 // pred_fallthru
      _
    // Predicated region
    $region42: #{tpu_custom_call.1} parent=1 // pred_check
      _
    $region43: #{tpu_custom_call.1} parent=1 // pred_check_branch
      %112 = sbr.rel (0) target = $region45
    $region44: #{tpu_custom_call.1} parent=1 // pred_region
      %113 = dma.done [#allocation6], 65536
    $region45: #{tpu_custom_call.1} parent=1 // pred_fallthru
      _
    // Predicated region
    $region46: #{tpu_custom_call.1} parent=1 // pred_check
      _
    $region47: #{tpu_custom_call.1} parent=1 // pred_check_branch
      %115 = sbr.rel (0) target = $region49
    $region48: #{tpu_custom_call.1} parent=1 // pred_region
      %116 = dma.done [#allocation6], 64
    $region49: #{tpu_custom_call.1} parent=1 // pred_fallthru
      _
    // Predicated region
    $region50: #{tpu_custom_call.1} parent=1 // pred_check
      _
    $region51: #{tpu_custom_call.1} parent=1 // pred_check_branch
      %118 = sbr.rel (0) target = $region53
    $region52: #{tpu_custom_call.1} parent=1 // pred_region
      %119 = dma.done [#allocation9], 16384
    $region53: #{tpu_custom_call.1} parent=1 // pred_fallthru
      _
    // Predicated region
    $region54: #{tpu_custom_call.1} parent=1 // pred_check
      _
    $region55: #{tpu_custom_call.1} parent=1 // pred_check_branch
      %121 = sbr.rel (0) target = $region57
    $region56: #{tpu_custom_call.1} parent=1 // pred_region
      %122 = dma.done [#allocation9], 32
    $region57: #{tpu_custom_call.1} parent=1 // pred_fallthru
      _
    // Predicated region
    $region58: #{tpu_custom_call.1} parent=1 // pred_check
      _
    $region59: #{tpu_custom_call.1} parent=1 // pred_check_branch
      %124 = sbr.rel (0) target = $region61
    $region60: #{tpu_custom_call.1} parent=1 // pred_region
      %125 = dma.done [#allocation12], 8192
    $region61: #{tpu_custom_call.1} parent=1 // pred_fallthru
      _
    // Predicated region
    $region62: #{tpu_custom_call.1} parent=1 // pred_check
      _
    $region63: #{tpu_custom_call.1} parent=1 // pred_check_branch
      %127 = sbr.rel (0) target = $region65
    $region64: #{tpu_custom_call.1} parent=1 // pred_region
      %128 = dma.done [#allocation12], 32
    $region65: #{tpu_custom_call.1} parent=1 // pred_fallthru
      _
    // Predicated region
    $region66: #{tpu_custom_call.1} parent=1 // pred_check
      _
    $region67: #{tpu_custom_call.1} parent=1 // pred_check_branch
      %130 = sbr.rel (0) target = $region69
    $region68: #{tpu_custom_call.1} parent=1 // pred_region
      %131 = dma.done [#allocation15], 16
    $region69: #{tpu_custom_call.1} parent=1 // pred_fallthru
      _
    %v132 = vld [vmem:[#allocation2] sm:$0xff]
    %v133 = vld [vmem:[#allocation2 + $0x8] sm:$0xff]
    %v134 = vld [vmem:[#allocation5] sm:$0xff]
    %v135 = vld [vmem:[#allocation5 + $0x8] sm:$0xff]
    %v136 = vld [vmem:[#allocation5 + $0x10] sm:$0xff]
    %v137 = vld [vmem:[#allocation5 + $0x18] sm:$0xff]
    %v138 = vld [vmem:[#allocation5 + $0x20] sm:$0xff]
    %v139 = vld [vmem:[#allocation5 + $0x28] sm:$0xff]
    %v140 = vld [vmem:[#allocation5 + $0x30] sm:$0xff]
    %v141 = vld [vmem:[#allocation5 + $0x38] sm:$0xff]
    %v142 = vld [vmem:[#allocation5 + $0x40] sm:$0xff]
    %v143 = vld [vmem:[#allocation5 + $0x48] sm:$0xff]
    %v144 = vld [vmem:[#allocation5 + $0x50] sm:$0xff]
    %v145 = vld [vmem:[#allocation5 + $0x58] sm:$0xff]
    %v146 = vld [vmem:[#allocation5 + $0x60] sm:$0xff]
    %v147 = vld [vmem:[#allocation5 + $0x68] sm:$0xff]
    %v148 = vld [vmem:[#allocation5 + $0x70] sm:$0xff]
    %v149 = vld [vmem:[#allocation5 + $0x78] sm:$0xff]
    %v150 = vld [vmem:[#allocation5 + $0x80] sm:$0xff]
    %v151 = vld [vmem:[#allocation5 + $0x88] sm:$0xff]
    %v152 = vld [vmem:[#allocation5 + $0x90] sm:$0xff]
    %v153 = vld [vmem:[#allocation5 + $0x98] sm:$0xff]
    %v154 = vld [vmem:[#allocation5 + $0xa0] sm:$0xff]
    %v155 = vld [vmem:[#allocation5 + $0xa8] sm:$0xff]
    %v156 = vld [vmem:[#allocation5 + $0xb0] sm:$0xff]
    %v157 = vld [vmem:[#allocation5 + $0xb8] sm:$0xff]
    %v158 = vld [vmem:[#allocation5 + $0xc0] sm:$0xff]
    %v159 = vld [vmem:[#allocation5 + $0xc8] sm:$0xff]
    %v160 = vld [vmem:[#allocation5 + $0xd0] sm:$0xff]
    %v161 = vld [vmem:[#allocation5 + $0xd8] sm:$0xff]
    %v162 = vld [vmem:[#allocation5 + $0xe0] sm:$0xff]
    %v163 = vld [vmem:[#allocation5 + $0xe8] sm:$0xff]
    %v164 = vld [vmem:[#allocation5 + $0xf0] sm:$0xff]
    %v165 = vld [vmem:[#allocation5 + $0xf8] sm:$0xff]
    %v166 = vld [vmem:[#allocation5 + $0x100] sm:$0xff]
    %v167 = vld [vmem:[#allocation5 + $0x108] sm:$0xff]
    %v168 = vld [vmem:[#allocation5 + $0x110] sm:$0xff]
    %v169 = vld [vmem:[#allocation5 + $0x118] sm:$0xff]
    %v170 = vld [vmem:[#allocation5 + $0x120] sm:$0xff]
    %v171 = vld [vmem:[#allocation5 + $0x128] sm:$0xff]
    %v172 = vld [vmem:[#allocation5 + $0x130] sm:$0xff]
    %v173 = vld [vmem:[#allocation5 + $0x138] sm:$0xff]
    %v174 = vld [vmem:[#allocation5 + $0x140] sm:$0xff]
    %v175 = vld [vmem:[#allocation5 + $0x148] sm:$0xff]
    %v176 = vld [vmem:[#allocation5 + $0x150] sm:$0xff]
    %v177 = vld [vmem:[#allocation5 + $0x158] sm:$0xff]
    %v178 = vld [vmem:[#allocation5 + $0x160] sm:$0xff]
    %v179 = vld [vmem:[#allocation5 + $0x168] sm:$0xff]
    %v180 = vld [vmem:[#allocation5 + $0x170] sm:$0xff]
    %v181 = vld [vmem:[#allocation5 + $0x178] sm:$0xff]
    %v182 = vld [vmem:[#allocation5 + $0x180] sm:$0xff]
    %v183 = vld [vmem:[#allocation5 + $0x188] sm:$0xff]
    %v184 = vld [vmem:[#allocation5 + $0x190] sm:$0xff]
    %v185 = vld [vmem:[#allocation5 + $0x198] sm:$0xff]
    %v186 = vld [vmem:[#allocation5 + $0x1a0] sm:$0xff]
    %v187 = vld [vmem:[#allocation5 + $0x1a8] sm:$0xff]
    %v188 = vld [vmem:[#allocation5 + $0x1b0] sm:$0xff]
    %v189 = vld [vmem:[#allocation5 + $0x1b8] sm:$0xff]
    %v190 = vld [vmem:[#allocation5 + $0x1c0] sm:$0xff]
    %v191 = vld [vmem:[#allocation5 + $0x1c8] sm:$0xff]
    %v192 = vld [vmem:[#allocation5 + $0x1d0] sm:$0xff]
    %v193 = vld [vmem:[#allocation5 + $0x1d8] sm:$0xff]
    %v194 = vld [vmem:[#allocation5 + $0x1e0] sm:$0xff]
    %v195 = vld [vmem:[#allocation5 + $0x1e8] sm:$0xff]
    %v196 = vld [vmem:[#allocation5 + $0x1f0] sm:$0xff]
    %v197 = vld [vmem:[#allocation5 + $0x1f8] sm:$0xff]
    %v198 = vld [vmem:[#allocation5 + $0x200] sm:$0xff]
    %v199 = vld [vmem:[#allocation5 + $0x208] sm:$0xff]
    %v200 = vld [vmem:[#allocation5 + $0x210] sm:$0xff]
    %v201 = vld [vmem:[#allocation5 + $0x218] sm:$0xff]
    %v202 = vld [vmem:[#allocation5 + $0x220] sm:$0xff]
    %v203 = vld [vmem:[#allocation5 + $0x228] sm:$0xff]
    %v204 = vld [vmem:[#allocation5 + $0x230] sm:$0xff]
    %v205 = vld [vmem:[#allocation5 + $0x238] sm:$0xff]
    %v206 = vld [vmem:[#allocation5 + $0x240] sm:$0xff]
    %v207 = vld [vmem:[#allocation5 + $0x248] sm:$0xff]
    %v208 = vld [vmem:[#allocation5 + $0x250] sm:$0xff]
    %v209 = vld [vmem:[#allocation5 + $0x258] sm:$0xff]
    %v210 = vld [vmem:[#allocation5 + $0x260] sm:$0xff]
    %v211 = vld [vmem:[#allocation5 + $0x268] sm:$0xff]
    %v212 = vld [vmem:[#allocation5 + $0x270] sm:$0xff]
    %v213 = vld [vmem:[#allocation5 + $0x278] sm:$0xff]
    %v214 = vld [vmem:[#allocation5 + $0x280] sm:$0xff]
    %v215 = vld [vmem:[#allocation5 + $0x288] sm:$0xff]
    %v216 = vld [vmem:[#allocation5 + $0x290] sm:$0xff]
    %v217 = vld [vmem:[#allocation5 + $0x298] sm:$0xff]
    %v218 = vld [vmem:[#allocation5 + $0x2a0] sm:$0xff]
    %v219 = vld [vmem:[#allocation5 + $0x2a8] sm:$0xff]
    %v220 = vld [vmem:[#allocation5 + $0x2b0] sm:$0xff]
    %v221 = vld [vmem:[#allocation5 + $0x2b8] sm:$0xff]
    %v222 = vld [vmem:[#allocation5 + $0x2c0] sm:$0xff]
    %v223 = vld [vmem:[#allocation5 + $0x2c8] sm:$0xff]
    %v224 = vld [vmem:[#allocation5 + $0x2d0] sm:$0xff]
    %v225 = vld [vmem:[#allocation5 + $0x2d8] sm:$0xff]
    %v226 = vld [vmem:[#allocation5 + $0x2e0] sm:$0xff]
    %v227 = vld [vmem:[#allocation5 + $0x2e8] sm:$0xff]
    %v228 = vld [vmem:[#allocation5 + $0x2f0] sm:$0xff]
    %v229 = vld [vmem:[#allocation5 + $0x2f8] sm:$0xff]
    %v230 = vld [vmem:[#allocation5 + $0x300] sm:$0xff]
    %v231 = vld [vmem:[#allocation5 + $0x308] sm:$0xff]
    %v232 = vld [vmem:[#allocation5 + $0x310] sm:$0xff]
    %v233 = vld [vmem:[#allocation5 + $0x318] sm:$0xff]
    %v234 = vld [vmem:[#allocation5 + $0x320] sm:$0xff]
    %v235 = vld [vmem:[#allocation5 + $0x328] sm:$0xff]
    %v236 = vld [vmem:[#allocation5 + $0x330] sm:$0xff]
    %v237 = vld [vmem:[#allocation5 + $0x338] sm:$0xff]
    %v238 = vld [vmem:[#allocation5 + $0x340] sm:$0xff]
    %v239 = vld [vmem:[#allocation5 + $0x348] sm:$0xff]
    %v240 = vld [vmem:[#allocation5 + $0x350] sm:$0xff]
    %v241 = vld [vmem:[#allocation5 + $0x358] sm:$0xff]
    %v242 = vld [vmem:[#allocation5 + $0x360] sm:$0xff]
    %v243 = vld [vmem:[#allocation5 + $0x368] sm:$0xff]
    %v244 = vld [vmem:[#allocation5 + $0x370] sm:$0xff]
    %v245 = vld [vmem:[#allocation5 + $0x378] sm:$0xff]
    %v246 = vld [vmem:[#allocation5 + $0x380] sm:$0xff]
    %v247 = vld [vmem:[#allocation5 + $0x388] sm:$0xff]
    %v248 = vld [vmem:[#allocation5 + $0x390] sm:$0xff]
    %v249 = vld [vmem:[#allocation5 + $0x398] sm:$0xff]
    %v250 = vld [vmem:[#allocation5 + $0x3a0] sm:$0xff]
    %v251 = vld [vmem:[#allocation5 + $0x3a8] sm:$0xff]
    %v252 = vld [vmem:[#allocation5 + $0x3b0] sm:$0xff]
    %v253 = vld [vmem:[#allocation5 + $0x3b8] sm:$0xff]
    %v254 = vld [vmem:[#allocation5 + $0x3c0] sm:$0xff]
    %v255 = vld [vmem:[#allocation5 + $0x3c8] sm:$0xff]
    %v256 = vld [vmem:[#allocation5 + $0x3d0] sm:$0xff]
    %v257 = vld [vmem:[#allocation5 + $0x3d8] sm:$0xff]
    %v258 = vld [vmem:[#allocation5 + $0x3e0] sm:$0xff]
    %v259 = vld [vmem:[#allocation5 + $0x3e8] sm:$0xff]
    %v260 = vld [vmem:[#allocation5 + $0x3f0] sm:$0xff]
    %v261 = vld [vmem:[#allocation5 + $0x3f8] sm:$0xff]
    %v262 = vld [vmem:[#allocation5 + $0x400] sm:$0xff]
    %v263 = vld [vmem:[#allocation5 + $0x408] sm:$0xff]
    %v264 = vld [vmem:[#allocation5 + $0x410] sm:$0xff]
    %v265 = vld [vmem:[#allocation5 + $0x418] sm:$0xff]
    %v266 = vld [vmem:[#allocation5 + $0x420] sm:$0xff]
    %v267 = vld [vmem:[#allocation5 + $0x428] sm:$0xff]
    %v268 = vld [vmem:[#allocation5 + $0x430] sm:$0xff]
    %v269 = vld [vmem:[#allocation5 + $0x438] sm:$0xff]
    %v270 = vld [vmem:[#allocation5 + $0x440] sm:$0xff]
    %v271 = vld [vmem:[#allocation5 + $0x448] sm:$0xff]
    %v272 = vld [vmem:[#allocation5 + $0x450] sm:$0xff]
    %v273 = vld [vmem:[#allocation5 + $0x458] sm:$0xff]
    %v274 = vld [vmem:[#allocation5 + $0x460] sm:$0xff]
    %v275 = vld [vmem:[#allocation5 + $0x468] sm:$0xff]
    %v276 = vld [vmem:[#allocation5 + $0x470] sm:$0xff]
    %v277 = vld [vmem:[#allocation5 + $0x478] sm:$0xff]
    %v278 = vld [vmem:[#allocation5 + $0x480] sm:$0xff]
    %v279 = vld [vmem:[#allocation5 + $0x488] sm:$0xff]
    %v280 = vld [vmem:[#allocation5 + $0x490] sm:$0xff]
    %v281 = vld [vmem:[#allocation5 + $0x498] sm:$0xff]
    %v282 = vld [vmem:[#allocation5 + $0x4a0] sm:$0xff]
    %v283 = vld [vmem:[#allocation5 + $0x4a8] sm:$0xff]
    %v284 = vld [vmem:[#allocation5 + $0x4b0] sm:$0xff]
    %v285 = vld [vmem:[#allocation5 + $0x4b8] sm:$0xff]
    %v286 = vld [vmem:[#allocation5 + $0x4c0] sm:$0xff]
    %v287 = vld [vmem:[#allocation5 + $0x4c8] sm:$0xff]
    %v288 = vld [vmem:[#allocation5 + $0x4d0] sm:$0xff]
    %v289 = vld [vmem:[#allocation5 + $0x4d8] sm:$0xff]
    %v290 = vld [vmem:[#allocation5 + $0x4e0] sm:$0xff]
    %v291 = vld [vmem:[#allocation5 + $0x4e8] sm:$0xff]
    %v292 = vld [vmem:[#allocation5 + $0x4f0] sm:$0xff]
    %v293 = vld [vmem:[#allocation5 + $0x4f8] sm:$0xff]
    %v294 = vld [vmem:[#allocation5 + $0x500] sm:$0xff]
    %v295 = vld [vmem:[#allocation5 + $0x508] sm:$0xff]
    %v296 = vld [vmem:[#allocation5 + $0x510] sm:$0xff]
    %v297 = vld [vmem:[#allocation5 + $0x518] sm:$0xff]
    %v298 = vld [vmem:[#allocation5 + $0x520] sm:$0xff]
    %v299 = vld [vmem:[#allocation5 + $0x528] sm:$0xff]
    %v300 = vld [vmem:[#allocation5 + $0x530] sm:$0xff]
    %v301 = vld [vmem:[#allocation5 + $0x538] sm:$0xff]
    %v302 = vld [vmem:[#allocation5 + $0x540] sm:$0xff]
    %v303 = vld [vmem:[#allocation5 + $0x548] sm:$0xff]
    %v304 = vld [vmem:[#allocation5 + $0x550] sm:$0xff]
    %v305 = vld [vmem:[#allocation5 + $0x558] sm:$0xff]
    %v306 = vld [vmem:[#allocation5 + $0x560] sm:$0xff]
    %v307 = vld [vmem:[#allocation5 + $0x568] sm:$0xff]
    %v308 = vld [vmem:[#allocation5 + $0x570] sm:$0xff]
    %v309 = vld [vmem:[#allocation5 + $0x578] sm:$0xff]
    %v310 = vld [vmem:[#allocation5 + $0x580] sm:$0xff]
    %v311 = vld [vmem:[#allocation5 + $0x588] sm:$0xff]
    %v312 = vld [vmem:[#allocation5 + $0x590] sm:$0xff]
    %v313 = vld [vmem:[#allocation5 + $0x598] sm:$0xff]
    %v314 = vld [vmem:[#allocation5 + $0x5a0] sm:$0xff]
    %v315 = vld [vmem:[#allocation5 + $0x5a8] sm:$0xff]
    %v316 = vld [vmem:[#allocation5 + $0x5b0] sm:$0xff]
    %v317 = vld [vmem:[#allocation5 + $0x5b8] sm:$0xff]
    %v318 = vld [vmem:[#allocation5 + $0x5c0] sm:$0xff]
    %v319 = vld [vmem:[#allocation5 + $0x5c8] sm:$0xff]
    %v320 = vld [vmem:[#allocation5 + $0x5d0] sm:$0xff]
    %v321 = vld [vmem:[#allocation5 + $0x5d8] sm:$0xff]
    %v322 = vld [vmem:[#allocation5 + $0x5e0] sm:$0xff]
    %v323 = vld [vmem:[#allocation5 + $0x5e8] sm:$0xff]
    %v324 = vld [vmem:[#allocation5 + $0x5f0] sm:$0xff]
    %v325 = vld [vmem:[#allocation5 + $0x5f8] sm:$0xff]
    %v326 = vld [vmem:[#allocation5 + $0x600] sm:$0xff]
    %v327 = vld [vmem:[#allocation5 + $0x608] sm:$0xff]
    %v328 = vld [vmem:[#allocation5 + $0x610] sm:$0xff]
    %v329 = vld [vmem:[#allocation5 + $0x618] sm:$0xff]
    %v330 = vld [vmem:[#allocation5 + $0x620] sm:$0xff]
    %v331 = vld [vmem:[#allocation5 + $0x628] sm:$0xff]
    %v332 = vld [vmem:[#allocation5 + $0x630] sm:$0xff]
    %v333 = vld [vmem:[#allocation5 + $0x638] sm:$0xff]
    %v334 = vld [vmem:[#allocation5 + $0x640] sm:$0xff]
    %v335 = vld [vmem:[#allocation5 + $0x648] sm:$0xff]
    %v336 = vld [vmem:[#allocation5 + $0x650] sm:$0xff]
    %v337 = vld [vmem:[#allocation5 + $0x658] sm:$0xff]
    %v338 = vld [vmem:[#allocation5 + $0x660] sm:$0xff]
    %v339 = vld [vmem:[#allocation5 + $0x668] sm:$0xff]
    %v340 = vld [vmem:[#allocation5 + $0x670] sm:$0xff]
    %v341 = vld [vmem:[#allocation5 + $0x678] sm:$0xff]
    %v342 = vld [vmem:[#allocation5 + $0x680] sm:$0xff]
    %v343 = vld [vmem:[#allocation5 + $0x688] sm:$0xff]
    %v344 = vld [vmem:[#allocation5 + $0x690] sm:$0xff]
    %v345 = vld [vmem:[#allocation5 + $0x698] sm:$0xff]
    %v346 = vld [vmem:[#allocation5 + $0x6a0] sm:$0xff]
    %v347 = vld [vmem:[#allocation5 + $0x6a8] sm:$0xff]
    %v348 = vld [vmem:[#allocation5 + $0x6b0] sm:$0xff]
    %v349 = vld [vmem:[#allocation5 + $0x6b8] sm:$0xff]
    %v350 = vld [vmem:[#allocation5 + $0x6c0] sm:$0xff]
    %v351 = vld [vmem:[#allocation5 + $0x6c8] sm:$0xff]
    %v352 = vld [vmem:[#allocation5 + $0x6d0] sm:$0xff]
    %v353 = vld [vmem:[#allocation5 + $0x6d8] sm:$0xff]
    %v354 = vld [vmem:[#allocation5 + $0x6e0] sm:$0xff]
    %v355 = vld [vmem:[#allocation5 + $0x6e8] sm:$0xff]
    %v356 = vld [vmem:[#allocation5 + $0x6f0] sm:$0xff]
    %v357 = vld [vmem:[#allocation5 + $0x6f8] sm:$0xff]
    %v358 = vld [vmem:[#allocation5 + $0x700] sm:$0xff]
    %v359 = vld [vmem:[#allocation5 + $0x708] sm:$0xff]
    %v360 = vld [vmem:[#allocation5 + $0x710] sm:$0xff]
    %v361 = vld [vmem:[#allocation5 + $0x718] sm:$0xff]
    %v362 = vld [vmem:[#allocation5 + $0x720] sm:$0xff]
    %v363 = vld [vmem:[#allocation5 + $0x728] sm:$0xff]
    %v364 = vld [vmem:[#allocation5 + $0x730] sm:$0xff]
    %v365 = vld [vmem:[#allocation5 + $0x738] sm:$0xff]
    %v366 = vld [vmem:[#allocation5 + $0x740] sm:$0xff]
    %v367 = vld [vmem:[#allocation5 + $0x748] sm:$0xff]
    %v368 = vld [vmem:[#allocation5 + $0x750] sm:$0xff]
    %v369 = vld [vmem:[#allocation5 + $0x758] sm:$0xff]
    %v370 = vld [vmem:[#allocation5 + $0x760] sm:$0xff]
    %v371 = vld [vmem:[#allocation5 + $0x768] sm:$0xff]
    %v372 = vld [vmem:[#allocation5 + $0x770] sm:$0xff]
    %v373 = vld [vmem:[#allocation5 + $0x778] sm:$0xff]
    %v374 = vld [vmem:[#allocation5 + $0x780] sm:$0xff]
    %v375 = vld [vmem:[#allocation5 + $0x788] sm:$0xff]
    %v376 = vld [vmem:[#allocation5 + $0x790] sm:$0xff]
    %v377 = vld [vmem:[#allocation5 + $0x798] sm:$0xff]
    %v378 = vld [vmem:[#allocation5 + $0x7a0] sm:$0xff]
    %v379 = vld [vmem:[#allocation5 + $0x7a8] sm:$0xff]
    %v380 = vld [vmem:[#allocation5 + $0x7b0] sm:$0xff]
    %v381 = vld [vmem:[#allocation5 + $0x7b8] sm:$0xff]
    %v382 = vld [vmem:[#allocation5 + $0x7c0] sm:$0xff]
    %v383 = vld [vmem:[#allocation5 + $0x7c8] sm:$0xff]
    %v384 = vld [vmem:[#allocation5 + $0x7d0] sm:$0xff]
    %v385 = vld [vmem:[#allocation5 + $0x7d8] sm:$0xff]
    %v386 = vld [vmem:[#allocation5 + $0x7e0] sm:$0xff]
    %v387 = vld [vmem:[#allocation5 + $0x7e8] sm:$0xff]
    %v388 = vld [vmem:[#allocation5 + $0x7f0] sm:$0xff]
    %v389 = vld [vmem:[#allocation5 + $0x7f8] sm:$0xff]
    %v390 = vld [vmem:[#allocation5 + $0x800] sm:$0xff]
    %v391 = vld [vmem:[#allocation5 + $0x808] sm:$0xff]
    %v392 = vld [vmem:[#allocation5 + $0x810] sm:$0xff]
    %v393 = vld [vmem:[#allocation5 + $0x818] sm:$0xff]
    %v394 = vld [vmem:[#allocation5 + $0x820] sm:$0xff]
    %v395 = vld [vmem:[#allocation5 + $0x828] sm:$0xff]
    %v396 = vld [vmem:[#allocation5 + $0x830] sm:$0xff]
    %v397 = vld [vmem:[#allocation5 + $0x838] sm:$0xff]
    %v398 = vld [vmem:[#allocation5 + $0x840] sm:$0xff]
    %v399 = vld [vmem:[#allocation5 + $0x848] sm:$0xff]
    %v400 = vld [vmem:[#allocation5 + $0x850] sm:$0xff]
    %v401 = vld [vmem:[#allocation5 + $0x858] sm:$0xff]
    %v402 = vld [vmem:[#allocation5 + $0x860] sm:$0xff]
    %v403 = vld [vmem:[#allocation5 + $0x868] sm:$0xff]
    %v404 = vld [vmem:[#allocation5 + $0x870] sm:$0xff]
    %v405 = vld [vmem:[#allocation5 + $0x878] sm:$0xff]
    %v406 = vld [vmem:[#allocation5 + $0x880] sm:$0xff]
    %v407 = vld [vmem:[#allocation5 + $0x888] sm:$0xff]
    %v408 = vld [vmem:[#allocation5 + $0x890] sm:$0xff]
    %v409 = vld [vmem:[#allocation5 + $0x898] sm:$0xff]
    %v410 = vld [vmem:[#allocation5 + $0x8a0] sm:$0xff]
    %v411 = vld [vmem:[#allocation5 + $0x8a8] sm:$0xff]
    %v412 = vld [vmem:[#allocation5 + $0x8b0] sm:$0xff]
    %v413 = vld [vmem:[#allocation5 + $0x8b8] sm:$0xff]
    %v414 = vld [vmem:[#allocation5 + $0x8c0] sm:$0xff]
    %v415 = vld [vmem:[#allocation5 + $0x8c8] sm:$0xff]
    %v416 = vld [vmem:[#allocation5 + $0x8d0] sm:$0xff]
    %v417 = vld [vmem:[#allocation5 + $0x8d8] sm:$0xff]
    %v418 = vld [vmem:[#allocation5 + $0x8e0] sm:$0xff]
    %v419 = vld [vmem:[#allocation5 + $0x8e8] sm:$0xff]
    %v420 = vld [vmem:[#allocation5 + $0x8f0] sm:$0xff]
    %v421 = vld [vmem:[#allocation5 + $0x8f8] sm:$0xff]
    %v422 = vld [vmem:[#allocation5 + $0x900] sm:$0xff]
    %v423 = vld [vmem:[#allocation5 + $0x908] sm:$0xff]
    %v424 = vld [vmem:[#allocation5 + $0x910] sm:$0xff]
    %v425 = vld [vmem:[#allocation5 + $0x918] sm:$0xff]
    %v426 = vld [vmem:[#allocation5 + $0x920] sm:$0xff]
    %v427 = vld [vmem:[#allocation5 + $0x928] sm:$0xff]
    %v428 = vld [vmem:[#allocation5 + $0x930] sm:$0xff]
    %v429 = vld [vmem:[#allocation5 + $0x938] sm:$0xff]
    %v430 = vld [vmem:[#allocation5 + $0x940] sm:$0xff]
    %v431 = vld [vmem:[#allocation5 + $0x948] sm:$0xff]
    %v432 = vld [vmem:[#allocation5 + $0x950] sm:$0xff]
    %v433 = vld [vmem:[#allocation5 + $0x958] sm:$0xff]
    %v434 = vld [vmem:[#allocation5 + $0x960] sm:$0xff]
    %v435 = vld [vmem:[#allocation5 + $0x968] sm:$0xff]
    %v436 = vld [vmem:[#allocation5 + $0x970] sm:$0xff]
    %v437 = vld [vmem:[#allocation5 + $0x978] sm:$0xff]
    %v438 = vld [vmem:[#allocation5 + $0x980] sm:$0xff]
    %v439 = vld [vmem:[#allocation5 + $0x988] sm:$0xff]
    %v440 = vld [vmem:[#allocation5 + $0x990] sm:$0xff]
    %v441 = vld [vmem:[#allocation5 + $0x998] sm:$0xff]
    %v442 = vld [vmem:[#allocation5 + $0x9a0] sm:$0xff]
    %v443 = vld [vmem:[#allocation5 + $0x9a8] sm:$0xff]
    %v444 = vld [vmem:[#allocation5 + $0x9b0] sm:$0xff]
    %v445 = vld [vmem:[#allocation5 + $0x9b8] sm:$0xff]
    %v446 = vld [vmem:[#allocation5 + $0x9c0] sm:$0xff]
    %v447 = vld [vmem:[#allocation5 + $0x9c8] sm:$0xff]
    %v448 = vld [vmem:[#allocation5 + $0x9d0] sm:$0xff]
    %v449 = vld [vmem:[#allocation5 + $0x9d8] sm:$0xff]
    %v450 = vld [vmem:[#allocation5 + $0x9e0] sm:$0xff]
    %v451 = vld [vmem:[#allocation5 + $0x9e8] sm:$0xff]
    %v452 = vld [vmem:[#allocation5 + $0x9f0] sm:$0xff]
    %v453 = vld [vmem:[#allocation5 + $0x9f8] sm:$0xff]
    %v454 = vld [vmem:[#allocation5 + $0xa00] sm:$0xff]
    %v455 = vld [vmem:[#allocation5 + $0xa08] sm:$0xff]
    %v456 = vld [vmem:[#allocation5 + $0xa10] sm:$0xff]
    %v457 = vld [vmem:[#allocation5 + $0xa18] sm:$0xff]
    %v458 = vld [vmem:[#allocation5 + $0xa20] sm:$0xff]
    %v459 = vld [vmem:[#allocation5 + $0xa28] sm:$0xff]
    %v460 = vld [vmem:[#allocation5 + $0xa30] sm:$0xff]
    %v461 = vld [vmem:[#allocation5 + $0xa38] sm:$0xff]
    %v462 = vld [vmem:[#allocation5 + $0xa40] sm:$0xff]
    %v463 = vld [vmem:[#allocation5 + $0xa48] sm:$0xff]
    %v464 = vld [vmem:[#allocation5 + $0xa50] sm:$0xff]
    %v465 = vld [vmem:[#allocation5 + $0xa58] sm:$0xff]
    %v466 = vld [vmem:[#allocation5 + $0xa60] sm:$0xff]
    %v467 = vld [vmem:[#allocation5 + $0xa68] sm:$0xff]
    %v468 = vld [vmem:[#allocation5 + $0xa70] sm:$0xff]
    %v469 = vld [vmem:[#allocation5 + $0xa78] sm:$0xff]
    %v470 = vld [vmem:[#allocation5 + $0xa80] sm:$0xff]
    %v471 = vld [vmem:[#allocation5 + $0xa88] sm:$0xff]
    %v472 = vld [vmem:[#allocation5 + $0xa90] sm:$0xff]
    %v473 = vld [vmem:[#allocation5 + $0xa98] sm:$0xff]
    %v474 = vld [vmem:[#allocation5 + $0xaa0] sm:$0xff]
    %v475 = vld [vmem:[#allocation5 + $0xaa8] sm:$0xff]
    %v476 = vld [vmem:[#allocation5 + $0xab0] sm:$0xff]
    %v477 = vld [vmem:[#allocation5 + $0xab8] sm:$0xff]
    %v478 = vld [vmem:[#allocation5 + $0xac0] sm:$0xff]
    %v479 = vld [vmem:[#allocation5 + $0xac8] sm:$0xff]
    %v480 = vld [vmem:[#allocation5 + $0xad0] sm:$0xff]
    %v481 = vld [vmem:[#allocation5 + $0xad8] sm:$0xff]
    %v482 = vld [vmem:[#allocation5 + $0xae0] sm:$0xff]
    %v483 = vld [vmem:[#allocation5 + $0xae8] sm:$0xff]
    %v484 = vld [vmem:[#allocation5 + $0xaf0] sm:$0xff]
    %v485 = vld [vmem:[#allocation5 + $0xaf8] sm:$0xff]
    %v486 = vld [vmem:[#allocation5 + $0xb00] sm:$0xff]
    %v487 = vld [vmem:[#allocation5 + $0xb08] sm:$0xff]
    %v488 = vld [vmem:[#allocation5 + $0xb10] sm:$0xff]
    %v489 = vld [vmem:[#allocation5 + $0xb18] sm:$0xff]
    %v490 = vld [vmem:[#allocation5 + $0xb20] sm:$0xff]
    %v491 = vld [vmem:[#allocation5 + $0xb28] sm:$0xff]
    %v492 = vld [vmem:[#allocation5 + $0xb30] sm:$0xff]
    %v493 = vld [vmem:[#allocation5 + $0xb38] sm:$0xff]
    %v494 = vld [vmem:[#allocation5 + $0xb40] sm:$0xff]
    %v495 = vld [vmem:[#allocation5 + $0xb48] sm:$0xff]
    %v496 = vld [vmem:[#allocation5 + $0xb50] sm:$0xff]
    %v497 = vld [vmem:[#allocation5 + $0xb58] sm:$0xff]
    %v498 = vld [vmem:[#allocation5 + $0xb60] sm:$0xff]
    %v499 = vld [vmem:[#allocation5 + $0xb68] sm:$0xff]
    %v500 = vld [vmem:[#allocation5 + $0xb70] sm:$0xff]
    %v501 = vld [vmem:[#allocation5 + $0xb78] sm:$0xff]
    %v502 = vld [vmem:[#allocation5 + $0xb80] sm:$0xff]
    %v503 = vld [vmem:[#allocation5 + $0xb88] sm:$0xff]
    %v504 = vld [vmem:[#allocation5 + $0xb90] sm:$0xff]
    %v505 = vld [vmem:[#allocation5 + $0xb98] sm:$0xff]
    %v506 = vld [vmem:[#allocation5 + $0xba0] sm:$0xff]
    %v507 = vld [vmem:[#allocation5 + $0xba8] sm:$0xff]
    %v508 = vld [vmem:[#allocation5 + $0xbb0] sm:$0xff]
    %v509 = vld [vmem:[#allocation5 + $0xbb8] sm:$0xff]
    %v510 = vld [vmem:[#allocation5 + $0xbc0] sm:$0xff]
    %v511 = vld [vmem:[#allocation5 + $0xbc8] sm:$0xff]
    %v512 = vld [vmem:[#allocation5 + $0xbd0] sm:$0xff]
    %v513 = vld [vmem:[#allocation5 + $0xbd8] sm:$0xff]
    %v514 = vld [vmem:[#allocation5 + $0xbe0] sm:$0xff]
    %v515 = vld [vmem:[#allocation5 + $0xbe8] sm:$0xff]
    %v516 = vld [vmem:[#allocation5 + $0xbf0] sm:$0xff]
    %v517 = vld [vmem:[#allocation5 + $0xbf8] sm:$0xff]
    %v518 = vld [vmem:[#allocation5 + $0xc00] sm:$0xff]
    %v519 = vld [vmem:[#allocation5 + $0xc08] sm:$0xff]
    %v520 = vld [vmem:[#allocation5 + $0xc10] sm:$0xff]
    %v521 = vld [vmem:[#allocation5 + $0xc18] sm:$0xff]
    %v522 = vld [vmem:[#allocation5 + $0xc20] sm:$0xff]
    %v523 = vld [vmem:[#allocation5 + $0xc28] sm:$0xff]
    %v524 = vld [vmem:[#allocation5 + $0xc30] sm:$0xff]
    %v525 = vld [vmem:[#allocation5 + $0xc38] sm:$0xff]
    %v526 = vld [vmem:[#allocation5 + $0xc40] sm:$0xff]
    %v527 = vld [vmem:[#allocation5 + $0xc48] sm:$0xff]
    %v528 = vld [vmem:[#allocation5 + $0xc50] sm:$0xff]
    %v529 = vld [vmem:[#allocation5 + $0xc58] sm:$0xff]
    %v530 = vld [vmem:[#allocation5 + $0xc60] sm:$0xff]
    %v531 = vld [vmem:[#allocation5 + $0xc68] sm:$0xff]
    %v532 = vld [vmem:[#allocation5 + $0xc70] sm:$0xff]
    %v533 = vld [vmem:[#allocation5 + $0xc78] sm:$0xff]
    %v534 = vld [vmem:[#allocation5 + $0xc80] sm:$0xff]
    %v535 = vld [vmem:[#allocation5 + $0xc88] sm:$0xff]
    %v536 = vld [vmem:[#allocation5 + $0xc90] sm:$0xff]
    %v537 = vld [vmem:[#allocation5 + $0xc98] sm:$0xff]
    %v538 = vld [vmem:[#allocation5 + $0xca0] sm:$0xff]
    %v539 = vld [vmem:[#allocation5 + $0xca8] sm:$0xff]
    %v540 = vld [vmem:[#allocation5 + $0xcb0] sm:$0xff]
    %v541 = vld [vmem:[#allocation5 + $0xcb8] sm:$0xff]
    %v542 = vld [vmem:[#allocation5 + $0xcc0] sm:$0xff]
    %v543 = vld [vmem:[#allocation5 + $0xcc8] sm:$0xff]
    %v544 = vld [vmem:[#allocation5 + $0xcd0] sm:$0xff]
    %v545 = vld [vmem:[#allocation5 + $0xcd8] sm:$0xff]
    %v546 = vld [vmem:[#allocation5 + $0xce0] sm:$0xff]
    %v547 = vld [vmem:[#allocation5 + $0xce8] sm:$0xff]
    %v548 = vld [vmem:[#allocation5 + $0xcf0] sm:$0xff]
    %v549 = vld [vmem:[#allocation5 + $0xcf8] sm:$0xff]
    %v550 = vld [vmem:[#allocation5 + $0xd00] sm:$0xff]
    %v551 = vld [vmem:[#allocation5 + $0xd08] sm:$0xff]
    %v552 = vld [vmem:[#allocation5 + $0xd10] sm:$0xff]
    %v553 = vld [vmem:[#allocation5 + $0xd18] sm:$0xff]
    %v554 = vld [vmem:[#allocation5 + $0xd20] sm:$0xff]
    %v555 = vld [vmem:[#allocation5 + $0xd28] sm:$0xff]
    %v556 = vld [vmem:[#allocation5 + $0xd30] sm:$0xff]
    %v557 = vld [vmem:[#allocation5 + $0xd38] sm:$0xff]
    %v558 = vld [vmem:[#allocation5 + $0xd40] sm:$0xff]
    %v559 = vld [vmem:[#allocation5 + $0xd48] sm:$0xff]
    %v560 = vld [vmem:[#allocation5 + $0xd50] sm:$0xff]
    %v561 = vld [vmem:[#allocation5 + $0xd58] sm:$0xff]
    %v562 = vld [vmem:[#allocation5 + $0xd60] sm:$0xff]
    %v563 = vld [vmem:[#allocation5 + $0xd68] sm:$0xff]
    %v564 = vld [vmem:[#allocation5 + $0xd70] sm:$0xff]
    %v565 = vld [vmem:[#allocation5 + $0xd78] sm:$0xff]
    %v566 = vld [vmem:[#allocation5 + $0xd80] sm:$0xff]
    %v567 = vld [vmem:[#allocation5 + $0xd88] sm:$0xff]
    %v568 = vld [vmem:[#allocation5 + $0xd90] sm:$0xff]
    %v569 = vld [vmem:[#allocation5 + $0xd98] sm:$0xff]
    %v570 = vld [vmem:[#allocation5 + $0xda0] sm:$0xff]
    %v571 = vld [vmem:[#allocation5 + $0xda8] sm:$0xff]
    %v572 = vld [vmem:[#allocation5 + $0xdb0] sm:$0xff]
    %v573 = vld [vmem:[#allocation5 + $0xdb8] sm:$0xff]
    %v574 = vld [vmem:[#allocation5 + $0xdc0] sm:$0xff]
    %v575 = vld [vmem:[#allocation5 + $0xdc8] sm:$0xff]
    %v576 = vld [vmem:[#allocation5 + $0xdd0] sm:$0xff]
    %v577 = vld [vmem:[#allocation5 + $0xdd8] sm:$0xff]
    %v578 = vld [vmem:[#allocation5 + $0xde0] sm:$0xff]
    %v579 = vld [vmem:[#allocation5 + $0xde8] sm:$0xff]
    %v580 = vld [vmem:[#allocation5 + $0xdf0] sm:$0xff]
    %v581 = vld [vmem:[#allocation5 + $0xdf8] sm:$0xff]
    %v582 = vld [vmem:[#allocation5 + $0xe00] sm:$0xff]
    %v583 = vld [vmem:[#allocation5 + $0xe08] sm:$0xff]
    %v584 = vld [vmem:[#allocation5 + $0xe10] sm:$0xff]
    %v585 = vld [vmem:[#allocation5 + $0xe18] sm:$0xff]
    %v586 = vld [vmem:[#allocation5 + $0xe20] sm:$0xff]
    %v587 = vld [vmem:[#allocation5 + $0xe28] sm:$0xff]
    %v588 = vld [vmem:[#allocation5 + $0xe30] sm:$0xff]
    %v589 = vld [vmem:[#allocation5 + $0xe38] sm:$0xff]
    %v590 = vld [vmem:[#allocation5 + $0xe40] sm:$0xff]
    %v591 = vld [vmem:[#allocation5 + $0xe48] sm:$0xff]
    %v592 = vld [vmem:[#allocation5 + $0xe50] sm:$0xff]
    %v593 = vld [vmem:[#allocation5 + $0xe58] sm:$0xff]
    %v594 = vld [vmem:[#allocation5 + $0xe60] sm:$0xff]
    %v595 = vld [vmem:[#allocation5 + $0xe68] sm:$0xff]
    %v596 = vld [vmem:[#allocation5 + $0xe70] sm:$0xff]
    %v597 = vld [vmem:[#allocation5 + $0xe78] sm:$0xff]
    %v598 = vld [vmem:[#allocation5 + $0xe80] sm:$0xff]
    %v599 = vld [vmem:[#allocation5 + $0xe88] sm:$0xff]
    %v600 = vld [vmem:[#allocation5 + $0xe90] sm:$0xff]
    %v601 = vld [vmem:[#allocation5 + $0xe98] sm:$0xff]
    %v602 = vld [vmem:[#allocation5 + $0xea0] sm:$0xff]
    %v603 = vld [vmem:[#allocation5 + $0xea8] sm:$0xff]
    %v604 = vld [vmem:[#allocation5 + $0xeb0] sm:$0xff]
    %v605 = vld [vmem:[#allocation5 + $0xeb8] sm:$0xff]
    %v606 = vld [vmem:[#allocation5 + $0xec0] sm:$0xff]
    %v607 = vld [vmem:[#allocation5 + $0xec8] sm:$0xff]
    %v608 = vld [vmem:[#allocation5 + $0xed0] sm:$0xff]
    %v609 = vld [vmem:[#allocation5 + $0xed8] sm:$0xff]
    %v610 = vld [vmem:[#allocation5 + $0xee0] sm:$0xff]
    %v611 = vld [vmem:[#allocation5 + $0xee8] sm:$0xff]
    %v612 = vld [vmem:[#allocation5 + $0xef0] sm:$0xff]
    %v613 = vld [vmem:[#allocation5 + $0xef8] sm:$0xff]
    %v614 = vld [vmem:[#allocation5 + $0xf00] sm:$0xff]
    %v615 = vld [vmem:[#allocation5 + $0xf08] sm:$0xff]
    %v616 = vld [vmem:[#allocation5 + $0xf10] sm:$0xff]
    %v617 = vld [vmem:[#allocation5 + $0xf18] sm:$0xff]
    %v618 = vld [vmem:[#allocation5 + $0xf20] sm:$0xff]
    %v619 = vld [vmem:[#allocation5 + $0xf28] sm:$0xff]
    %v620 = vld [vmem:[#allocation5 + $0xf30] sm:$0xff]
    %v621 = vld [vmem:[#allocation5 + $0xf38] sm:$0xff]
    %v622 = vld [vmem:[#allocation5 + $0xf40] sm:$0xff]
    %v623 = vld [vmem:[#allocation5 + $0xf48] sm:$0xff]
    %v624 = vld [vmem:[#allocation5 + $0xf50] sm:$0xff]
    %v625 = vld [vmem:[#allocation5 + $0xf58] sm:$0xff]
    %v626 = vld [vmem:[#allocation5 + $0xf60] sm:$0xff]
    %v627 = vld [vmem:[#allocation5 + $0xf68] sm:$0xff]
    %v628 = vld [vmem:[#allocation5 + $0xf70] sm:$0xff]
    %v629 = vld [vmem:[#allocation5 + $0xf78] sm:$0xff]
    %v630 = vld [vmem:[#allocation5 + $0xf80] sm:$0xff]
    %v631 = vld [vmem:[#allocation5 + $0xf88] sm:$0xff]
    %v632 = vld [vmem:[#allocation5 + $0xf90] sm:$0xff]
    %v633 = vld [vmem:[#allocation5 + $0xf98] sm:$0xff]
    %v634 = vld [vmem:[#allocation5 + $0xfa0] sm:$0xff]
    %v635 = vld [vmem:[#allocation5 + $0xfa8] sm:$0xff]
    %v636 = vld [vmem:[#allocation5 + $0xfb0] sm:$0xff]
    %v637 = vld [vmem:[#allocation5 + $0xfb8] sm:$0xff]
    %v638 = vld [vmem:[#allocation5 + $0xfc0] sm:$0xff]
    %v639 = vld [vmem:[#allocation5 + $0xfc8] sm:$0xff]
    %v640 = vld [vmem:[#allocation5 + $0xfd0] sm:$0xff]
    %v641 = vld [vmem:[#allocation5 + $0xfd8] sm:$0xff]
    %v642 = vld [vmem:[#allocation5 + $0xfe0] sm:$0xff]
    %v643 = vld [vmem:[#allocation5 + $0xfe8] sm:$0xff]
    %v644 = vld [vmem:[#allocation5 + $0xff0] sm:$0xff]
    %v645 = vld [vmem:[#allocation5 + $0xff8] sm:$0xff]
    %v646 = vld [vmem:[#allocation7] sm:$0xf]
    %v648 = vlaneseq
    %v649 = vshrl.u32 %v648, 7
    %v650 = vsub.s32 0, %v649
    %v651 = vrot.slane %v646, %v650
    %v652 = vlaneseq
    %v653 = vshrl.u32 %v652, 7
    %v654 = vsub.s32 1, %v653
    %v655 = vrot.slane %v646, %v654
    %v656 = vlaneseq
    %v657 = vshrl.u32 %v656, 7
    %v658 = vsub.s32 2, %v657
    %v659 = vrot.slane %v646, %v658
    %v660 = vlaneseq
    %v661 = vshrl.u32 %v660, 7
    %v662 = vsub.s32 3, %v661
    %v663 = vrot.slane %v646, %v662
    %v670 = vcombine.high %v132, %v132
    %v672 = vunpack.c.l.s4 1983009808
    %v673 = vunpack.c.0.s8 %v672
    %v674 = vlaneseq
    %v675 = vshrl.u32 %v674, 7
    %v676 = vsub.s32 %v673, %v675
    %v677 = vrot.slane %v132, %v676
    %v679 = vunpack.c.l.s4 1983009808
    %v680 = vunpack.c.0.s8 %v679
    %v681 = vlaneseq
    %v682 = vshrl.u32 %v681, 7
    %v683 = vsub.s32 %v680, %v682
    %v684 = vrot.slane %v670, %v683
    %v685 = vcombine.high %v677, %v677
    %v686 = vcombine.high %v684, %v684
    %v687 = vcombine.high %v133, %v133
    %v689 = vunpack.c.l.s4 1983009808
    %v690 = vunpack.c.0.s8 %v689
    %v691 = vlaneseq
    %v692 = vshrl.u32 %v691, 7
    %v693 = vsub.s32 %v690, %v692
    %v694 = vrot.slane %v133, %v693
    %v696 = vunpack.c.l.s4 1983009808
    %v697 = vunpack.c.0.s8 %v696
    %v698 = vlaneseq
    %v699 = vshrl.u32 %v698, 7
    %v700 = vsub.s32 %v697, %v699
    %v701 = vrot.slane %v687, %v700
    %v702 = vcombine.high %v694, %v694
    %v703 = vcombine.high %v701, %v701
    %712 = vmatprep.subr.mxu0 %v135
    %713 = vmatpush1.msra.mxu0 %v134
    %714 = vmatprep.subr.mxu0 %v139
    %715 = vmatpush1.msra.mxu0 %v138
    %716 = vmatprep.subr.mxu0 %v143
    %717 = vmatpush1.msra.mxu0 %v142
    %718 = vmatprep.subr.mxu0 %v147
    %719 = vmatpush1.msra.mxu0 %v146
    %720 = vmatprep.subr.mxu0 %v151
    %721 = vmatpush1.msra.mxu0 %v150
    %722 = vmatprep.subr.mxu0 %v155
    %723 = vmatpush1.msra.mxu0 %v154
    %724 = vmatprep.subr.mxu0 %v159
    %725 = vmatpush1.msra.mxu0 %v158
    %726 = vmatprep.subr.mxu0 %v163
    %727 = vmatpush1.msra.mxu0 %v162
    %728 = vmatprep.subr.mxu0 %v167
    %729 = vmatpush1.msra.mxu0 %v166
    %730 = vmatprep.subr.mxu0 %v171
    %731 = vmatpush1.msra.mxu0 %v170
    %732 = vmatprep.subr.mxu0 %v175
    %733 = vmatpush1.msra.mxu0 %v174
    %734 = vmatprep.subr.mxu0 %v179
    %735 = vmatpush1.msra.mxu0 %v178
    %736 = vmatprep.subr.mxu0 %v183
    %737 = vmatpush1.msra.mxu0 %v182
    %738 = vmatprep.subr.mxu0 %v187
    %739 = vmatpush1.msra.mxu0 %v186
    %740 = vmatprep.subr.mxu0 %v191
    %741 = vmatpush1.msra.mxu0 %v190
    %742 = vmatprep.subr.mxu0 %v195
    %743 = vmatpush1.msra.mxu0 %v194
    %744 = vmatprep.subr.mxu0 %v199
    %745 = vmatpush1.msra.mxu0 %v198
    %746 = vmatprep.subr.mxu0 %v203
    %747 = vmatpush1.msra.mxu0 %v202
    %748 = vmatprep.subr.mxu0 %v207
    %749 = vmatpush1.msra.mxu0 %v206
    %750 = vmatprep.subr.mxu0 %v211
    %751 = vmatpush1.msra.mxu0 %v210
    %752 = vmatprep.subr.mxu0 %v215
    %753 = vmatpush1.msra.mxu0 %v214
    %754 = vmatprep.subr.mxu0 %v219
    %755 = vmatpush1.msra.mxu0 %v218
    %756 = vmatprep.subr.mxu0 %v223
    %757 = vmatpush1.msra.mxu0 %v222
    %758 = vmatprep.subr.mxu0 %v227
    %759 = vmatpush1.msra.mxu0 %v226
    %760 = vmatprep.subr.mxu0 %v231
    %761 = vmatpush1.msra.mxu0 %v230
    %762 = vmatprep.subr.mxu0 %v235
    %763 = vmatpush1.msra.mxu0 %v234
    %764 = vmatprep.subr.mxu0 %v239
    %765 = vmatpush1.msra.mxu0 %v238
    %766 = vmatprep.subr.mxu0 %v243
    %767 = vmatpush1.msra.mxu0 %v242
    %768 = vmatprep.subr.mxu0 %v247
    %769 = vmatpush1.msra.mxu0 %v246
    %770 = vmatprep.subr.mxu0 %v251
    %771 = vmatpush1.msra.mxu0 %v250
    %772 = vmatprep.subr.mxu0 %v255
    %773 = vmatpush1.msra.mxu0 %v254
    %774 = vmatprep.subr.mxu0 %v259
    %775 = vmatpush1.msra.mxu0 %v258
    %776 = vmatprep.mubr.f32.mxu0 %v685
    %777 = vmatmul.mubr.f32.gmra.mrb[0].mxu0 %v677
    %v778 = vpop.f32.mrb[0].mxu0
    %v779 = vadd.f32 %v651, %v778
    %v780 = vpop.f32.mrb[0].mxu0
    %v781 = vadd.f32 %v655, %v780
    %782 = vdwg.mxu0
    %783 = vmatprep.subr.mxu0 %v263
    %784 = vmatpush1.msra.mxu0 %v262
    %785 = vmatprep.subr.mxu0 %v267
    %786 = vmatpush1.msra.mxu0 %v266
    %787 = vmatprep.subr.mxu0 %v271
    %788 = vmatpush1.msra.mxu0 %v270
    %789 = vmatprep.subr.mxu0 %v275
    %790 = vmatpush1.msra.mxu0 %v274
    %791 = vmatprep.subr.mxu0 %v279
    %792 = vmatpush1.msra.mxu0 %v278
    %793 = vmatprep.subr.mxu0 %v283
    %794 = vmatpush1.msra.mxu0 %v282
    %795 = vmatprep.subr.mxu0 %v287
    %796 = vmatpush1.msra.mxu0 %v286
    %797 = vmatprep.subr.mxu0 %v291
    %798 = vmatpush1.msra.mxu0 %v290
    %799 = vmatprep.subr.mxu0 %v295
    %800 = vmatpush1.msra.mxu0 %v294
    %801 = vmatprep.subr.mxu0 %v299
    %802 = vmatpush1.msra.mxu0 %v298
    %803 = vmatprep.subr.mxu0 %v303
    %804 = vmatpush1.msra.mxu0 %v302
    %805 = vmatprep.subr.mxu0 %v307
    %806 = vmatpush1.msra.mxu0 %v306
    %807 = vmatprep.subr.mxu0 %v311
    %808 = vmatpush1.msra.mxu0 %v310
    %809 = vmatprep.subr.mxu0 %v315
    %810 = vmatpush1.msra.mxu0 %v314
    %811 = vmatprep.subr.mxu0 %v319
    %812 = vmatpush1.msra.mxu0 %v318
    %813 = vmatprep.subr.mxu0 %v323
    %814 = vmatpush1.msra.mxu0 %v322
    %815 = vmatprep.subr.mxu0 %v327
    %816 = vmatpush1.msra.mxu0 %v326
    %817 = vmatprep.subr.mxu0 %v331
    %818 = vmatpush1.msra.mxu0 %v330
    %819 = vmatprep.subr.mxu0 %v335
    %820 = vmatpush1.msra.mxu0 %v334
    %821 = vmatprep.subr.mxu0 %v339
    %822 = vmatpush1.msra.mxu0 %v338
    %823 = vmatprep.subr.mxu0 %v343
    %824 = vmatpush1.msra.mxu0 %v342
    %825 = vmatprep.subr.mxu0 %v347
    %826 = vmatpush1.msra.mxu0 %v346
    %827 = vmatprep.subr.mxu0 %v351
    %828 = vmatpush1.msra.mxu0 %v350
    %829 = vmatprep.subr.mxu0 %v355
    %830 = vmatpush1.msra.mxu0 %v354
    %831 = vmatprep.subr.mxu0 %v359
    %832 = vmatpush1.msra.mxu0 %v358
    %833 = vmatprep.subr.mxu0 %v363
    %834 = vmatpush1.msra.mxu0 %v362
    %835 = vmatprep.subr.mxu0 %v367
    %836 = vmatpush1.msra.mxu0 %v366
    %837 = vmatprep.subr.mxu0 %v371
    %838 = vmatpush1.msra.mxu0 %v370
    %839 = vmatprep.subr.mxu0 %v375
    %840 = vmatpush1.msra.mxu0 %v374
    %841 = vmatprep.subr.mxu0 %v379
    %842 = vmatpush1.msra.mxu0 %v378
    %843 = vmatprep.subr.mxu0 %v383
    %844 = vmatpush1.msra.mxu0 %v382
    %845 = vmatprep.subr.mxu0 %v387
    %846 = vmatpush1.msra.mxu0 %v386
    %847 = vmatprep.mubr.f32.mxu0 %v686
    %848 = vmatmul.mubr.f32.gmra.mrb[0].mxu0 %v684
    %v849 = vpop.f32.mrb[0].mxu0
    %v850 = vadd.f32 %v779, %v849
    %v851 = vpop.f32.mrb[0].mxu0
    %v852 = vadd.f32 %v781, %v851
    %853 = vdwg.mxu0
    %854 = vmatprep.subr.mxu0 %v391
    %855 = vmatpush1.msra.mxu0 %v390
    %856 = vmatprep.subr.mxu0 %v395
    %857 = vmatpush1.msra.mxu0 %v394
    %858 = vmatprep.subr.mxu0 %v399
    %859 = vmatpush1.msra.mxu0 %v398
    %860 = vmatprep.subr.mxu0 %v403
    %861 = vmatpush1.msra.mxu0 %v402
    %862 = vmatprep.subr.mxu0 %v407
    %863 = vmatpush1.msra.mxu0 %v406
    %864 = vmatprep.subr.mxu0 %v411
    %865 = vmatpush1.msra.mxu0 %v410
    %866 = vmatprep.subr.mxu0 %v415
    %867 = vmatpush1.msra.mxu0 %v414
    %868 = vmatprep.subr.mxu0 %v419
    %869 = vmatpush1.msra.mxu0 %v418
    %870 = vmatprep.subr.mxu0 %v423
    %871 = vmatpush1.msra.mxu0 %v422
    %872 = vmatprep.subr.mxu0 %v427
    %873 = vmatpush1.msra.mxu0 %v426
    %874 = vmatprep.subr.mxu0 %v431
    %875 = vmatpush1.msra.mxu0 %v430
    %876 = vmatprep.subr.mxu0 %v435
    %877 = vmatpush1.msra.mxu0 %v434
    %878 = vmatprep.subr.mxu0 %v439
    %879 = vmatpush1.msra.mxu0 %v438
    %880 = vmatprep.subr.mxu0 %v443
    %881 = vmatpush1.msra.mxu0 %v442
    %882 = vmatprep.subr.mxu0 %v447
    %883 = vmatpush1.msra.mxu0 %v446
    %884 = vmatprep.subr.mxu0 %v451
    %885 = vmatpush1.msra.mxu0 %v450
    %886 = vmatprep.subr.mxu0 %v455
    %887 = vmatpush1.msra.mxu0 %v454
    %888 = vmatprep.subr.mxu0 %v459
    %889 = vmatpush1.msra.mxu0 %v458
    %890 = vmatprep.subr.mxu0 %v463
    %891 = vmatpush1.msra.mxu0 %v462
    %892 = vmatprep.subr.mxu0 %v467
    %893 = vmatpush1.msra.mxu0 %v466
    %894 = vmatprep.subr.mxu0 %v471
    %895 = vmatpush1.msra.mxu0 %v470
    %896 = vmatprep.subr.mxu0 %v475
    %897 = vmatpush1.msra.mxu0 %v474
    %898 = vmatprep.subr.mxu0 %v479
    %899 = vmatpush1.msra.mxu0 %v478
    %900 = vmatprep.subr.mxu0 %v483
    %901 = vmatpush1.msra.mxu0 %v482
    %902 = vmatprep.subr.mxu0 %v487
    %903 = vmatpush1.msra.mxu0 %v486
    %904 = vmatprep.subr.mxu0 %v491
    %905 = vmatpush1.msra.mxu0 %v490
    %906 = vmatprep.subr.mxu0 %v495
    %907 = vmatpush1.msra.mxu0 %v494
    %908 = vmatprep.subr.mxu0 %v499
    %909 = vmatpush1.msra.mxu0 %v498
    %910 = vmatprep.subr.mxu0 %v503
    %911 = vmatpush1.msra.mxu0 %v502
    %912 = vmatprep.subr.mxu0 %v507
    %913 = vmatpush1.msra.mxu0 %v506
    %914 = vmatprep.subr.mxu0 %v511
    %915 = vmatpush1.msra.mxu0 %v510
    %916 = vmatprep.subr.mxu0 %v515
    %917 = vmatpush1.msra.mxu0 %v514
    %918 = vmatprep.mubr.f32.mxu0 %v702
    %919 = vmatmul.mubr.f32.gmra.mrb[0].mxu0 %v694
    %v920 = vpop.f32.mrb[0].mxu0
    %v921 = vadd.f32 %v850, %v920
    %v922 = vpop.f32.mrb[0].mxu0
    %v923 = vadd.f32 %v852, %v922
    %924 = vdwg.mxu0
    %925 = vmatprep.subr.mxu0 %v519
    %926 = vmatpush1.msra.mxu0 %v518
    %927 = vmatprep.subr.mxu0 %v523
    %928 = vmatpush1.msra.mxu0 %v522
    %929 = vmatprep.subr.mxu0 %v527
    %930 = vmatpush1.msra.mxu0 %v526
    %931 = vmatprep.subr.mxu0 %v531
    %932 = vmatpush1.msra.mxu0 %v530
    %933 = vmatprep.subr.mxu0 %v535
    %934 = vmatpush1.msra.mxu0 %v534
    %935 = vmatprep.subr.mxu0 %v539
    %936 = vmatpush1.msra.mxu0 %v538
    %937 = vmatprep.subr.mxu0 %v543
    %938 = vmatpush1.msra.mxu0 %v542
    %939 = vmatprep.subr.mxu0 %v547
    %940 = vmatpush1.msra.mxu0 %v546
    %941 = vmatprep.subr.mxu0 %v551
    %942 = vmatpush1.msra.mxu0 %v550
    %943 = vmatprep.subr.mxu0 %v555
    %944 = vmatpush1.msra.mxu0 %v554
    %945 = vmatprep.subr.mxu0 %v559
    %946 = vmatpush1.msra.mxu0 %v558
    %947 = vmatprep.subr.mxu0 %v563
    %948 = vmatpush1.msra.mxu0 %v562
    %949 = vmatprep.subr.mxu0 %v567
    %950 = vmatpush1.msra.mxu0 %v566
    %951 = vmatprep.subr.mxu0 %v571
    %952 = vmatpush1.msra.mxu0 %v570
    %953 = vmatprep.subr.mxu0 %v575
    %954 = vmatpush1.msra.mxu0 %v574
    %955 = vmatprep.subr.mxu0 %v579
    %956 = vmatpush1.msra.mxu0 %v578
    %957 = vmatprep.subr.mxu0 %v583
    %958 = vmatpush1.msra.mxu0 %v582
    %959 = vmatprep.subr.mxu0 %v587
    %960 = vmatpush1.msra.mxu0 %v586
    %961 = vmatprep.subr.mxu0 %v591
    %962 = vmatpush1.msra.mxu0 %v590
    %963 = vmatprep.subr.mxu0 %v595
    %964 = vmatpush1.msra.mxu0 %v594
    %965 = vmatprep.subr.mxu0 %v599
    %966 = vmatpush1.msra.mxu0 %v598
    %967 = vmatprep.subr.mxu0 %v603
    %968 = vmatpush1.msra.mxu0 %v602
    %969 = vmatprep.subr.mxu0 %v607
    %970 = vmatpush1.msra.mxu0 %v606
    %971 = vmatprep.subr.mxu0 %v611
    %972 = vmatpush1.msra.mxu0 %v610
    %973 = vmatprep.subr.mxu0 %v615
    %974 = vmatpush1.msra.mxu0 %v614
    %975 = vmatprep.subr.mxu0 %v619
    %976 = vmatpush1.msra.mxu0 %v618
    %977 = vmatprep.subr.mxu0 %v623
    %978 = vmatpush1.msra.mxu0 %v622
    %979 = vmatprep.subr.mxu0 %v627
    %980 = vmatpush1.msra.mxu0 %v626
    %981 = vmatprep.subr.mxu0 %v631
    %982 = vmatpush1.msra.mxu0 %v630
    %983 = vmatprep.subr.mxu0 %v635
    %984 = vmatpush1.msra.mxu0 %v634
    %985 = vmatprep.subr.mxu0 %v639
    %986 = vmatpush1.msra.mxu0 %v638
    %987 = vmatprep.subr.mxu0 %v643
    %988 = vmatpush1.msra.mxu0 %v642
    %989 = vmatprep.mubr.f32.mxu0 %v703
    %990 = vmatmul.mubr.f32.gmra.mrb[0].mxu0 %v701
    %v991 = vpop.f32.mrb[0].mxu0
    %v992 = vadd.f32 %v921, %v991
    %v993 = vpop.f32.mrb[0].mxu0
    %v994 = vadd.f32 %v923, %v993
    %995 = vdwg.mxu0
    %996 = vmatprep.subr.mxu0 %v137
    %997 = vmatpush1.msra.mxu0 %v136
    %998 = vmatprep.subr.mxu0 %v141
    %999 = vmatpush1.msra.mxu0 %v140
    %1000 = vmatprep.subr.mxu0 %v145
    %1001 = vmatpush1.msra.mxu0 %v144
    %1002 = vmatprep.subr.mxu0 %v149
    %1003 = vmatpush1.msra.mxu0 %v148
    %1004 = vmatprep.subr.mxu0 %v153
    %1005 = vmatpush1.msra.mxu0 %v152
    %1006 = vmatprep.subr.mxu0 %v157
    %1007 = vmatpush1.msra.mxu0 %v156
    %1008 = vmatprep.subr.mxu0 %v161
    %1009 = vmatpush1.msra.mxu0 %v160
    %1010 = vmatprep.subr.mxu0 %v165
    %1011 = vmatpush1.msra.mxu0 %v164
    %1012 = vmatprep.subr.mxu0 %v169
    %1013 = vmatpush1.msra.mxu0 %v168
    %1014 = vmatprep.subr.mxu0 %v173
    %1015 = vmatpush1.msra.mxu0 %v172
    %1016 = vmatprep.subr.mxu0 %v177
    %1017 = vmatpush1.msra.mxu0 %v176
    %1018 = vmatprep.subr.mxu0 %v181
    %1019 = vmatpush1.msra.mxu0 %v180
    %1020 = vmatprep.subr.mxu0 %v185
    %1021 = vmatpush1.msra.mxu0 %v184
    %1022 = vmatprep.subr.mxu0 %v189
    %1023 = vmatpush1.msra.mxu0 %v188
    %1024 = vmatprep.subr.mxu0 %v193
    %1025 = vmatpush1.msra.mxu0 %v192
    %1026 = vmatprep.subr.mxu0 %v197
    %1027 = vmatpush1.msra.mxu0 %v196
    %1028 = vmatprep.subr.mxu0 %v201
    %1029 = vmatpush1.msra.mxu0 %v200
    %1030 = vmatprep.subr.mxu0 %v205
    %1031 = vmatpush1.msra.mxu0 %v204
    %1032 = vmatprep.subr.mxu0 %v209
    %1033 = vmatpush1.msra.mxu0 %v208
    %1034 = vmatprep.subr.mxu0 %v213
    %1035 = vmatpush1.msra.mxu0 %v212
    %1036 = vmatprep.subr.mxu0 %v217
    %1037 = vmatpush1.msra.mxu0 %v216
    %1038 = vmatprep.subr.mxu0 %v221
    %1039 = vmatpush1.msra.mxu0 %v220
    %1040 = vmatprep.subr.mxu0 %v225
    %1041 = vmatpush1.msra.mxu0 %v224
    %1042 = vmatprep.subr.mxu0 %v229
    %1043 = vmatpush1.msra.mxu0 %v228
    %1044 = vmatprep.subr.mxu0 %v233
    %1045 = vmatpush1.msra.mxu0 %v232
    %1046 = vmatprep.subr.mxu0 %v237
    %1047 = vmatpush1.msra.mxu0 %v236
    %1048 = vmatprep.subr.mxu0 %v241
    %1049 = vmatpush1.msra.mxu0 %v240
    %1050 = vmatprep.subr.mxu0 %v245
    %1051 = vmatpush1.msra.mxu0 %v244
    %1052 = vmatprep.subr.mxu0 %v249
    %1053 = vmatpush1.msra.mxu0 %v248
    %1054 = vmatprep.subr.mxu0 %v253
    %1055 = vmatpush1.msra.mxu0 %v252
    %1056 = vmatprep.subr.mxu0 %v257
    %1057 = vmatpush1.msra.mxu0 %v256
    %1058 = vmatprep.subr.mxu0 %v261
    %1059 = vmatpush1.msra.mxu0 %v260
    %1060 = vmatprep.mubr.f32.mxu0 %v685
    %1061 = vmatmul.mubr.f32.gmra.mrb[0].mxu0 %v677
    %v1062 = vpop.f32.mrb[0].mxu0
    %v1063 = vadd.f32 %v659, %v1062
    %v1064 = vpop.f32.mrb[0].mxu0
    %v1065 = vadd.f32 %v663, %v1064
    %1066 = vdwg.mxu0
    %1067 = vmatprep.subr.mxu0 %v265
    %1068 = vmatpush1.msra.mxu0 %v264
    %1069 = vmatprep.subr.mxu0 %v269
    %1070 = vmatpush1.msra.mxu0 %v268
    %1071 = vmatprep.subr.mxu0 %v273
    %1072 = vmatpush1.msra.mxu0 %v272
    %1073 = vmatprep.subr.mxu0 %v277
    %1074 = vmatpush1.msra.mxu0 %v276
    %1075 = vmatprep.subr.mxu0 %v281
    %1076 = vmatpush1.msra.mxu0 %v280
    %1077 = vmatprep.subr.mxu0 %v285
    %1078 = vmatpush1.msra.mxu0 %v284
    %1079 = vmatprep.subr.mxu0 %v289
    %1080 = vmatpush1.msra.mxu0 %v288
    %1081 = vmatprep.subr.mxu0 %v293
    %1082 = vmatpush1.msra.mxu0 %v292
    %1083 = vmatprep.subr.mxu0 %v297
    %1084 = vmatpush1.msra.mxu0 %v296
    %1085 = vmatprep.subr.mxu0 %v301
    %1086 = vmatpush1.msra.mxu0 %v300
    %1087 = vmatprep.subr.mxu0 %v305
    %1088 = vmatpush1.msra.mxu0 %v304
    %1089 = vmatprep.subr.mxu0 %v309
    %1090 = vmatpush1.msra.mxu0 %v308
    %1091 = vmatprep.subr.mxu0 %v313
    %1092 = vmatpush1.msra.mxu0 %v312
    %1093 = vmatprep.subr.mxu0 %v317
    %1094 = vmatpush1.msra.mxu0 %v316
    %1095 = vmatprep.subr.mxu0 %v321
    %1096 = vmatpush1.msra.mxu0 %v320
    %1097 = vmatprep.subr.mxu0 %v325
    %1098 = vmatpush1.msra.mxu0 %v324
    %1099 = vmatprep.subr.mxu0 %v329
    %1100 = vmatpush1.msra.mxu0 %v328
    %1101 = vmatprep.subr.mxu0 %v333
    %1102 = vmatpush1.msra.mxu0 %v332
    %1103 = vmatprep.subr.mxu0 %v337
    %1104 = vmatpush1.msra.mxu0 %v336
    %1105 = vmatprep.subr.mxu0 %v341
    %1106 = vmatpush1.msra.mxu0 %v340
    %1107 = vmatprep.subr.mxu0 %v345
    %1108 = vmatpush1.msra.mxu0 %v344
    %1109 = vmatprep.subr.mxu0 %v349
    %1110 = vmatpush1.msra.mxu0 %v348
    %1111 = vmatprep.subr.mxu0 %v353
    %1112 = vmatpush1.msra.mxu0 %v352
    %1113 = vmatprep.subr.mxu0 %v357
    %1114 = vmatpush1.msra.mxu0 %v356
    %1115 = vmatprep.subr.mxu0 %v361
    %1116 = vmatpush1.msra.mxu0 %v360
    %1117 = vmatprep.subr.mxu0 %v365
    %1118 = vmatpush1.msra.mxu0 %v364
    %1119 = vmatprep.subr.mxu0 %v369
    %1120 = vmatpush1.msra.mxu0 %v368
    %1121 = vmatprep.subr.mxu0 %v373
    %1122 = vmatpush1.msra.mxu0 %v372
    %1123 = vmatprep.subr.mxu0 %v377
    %1124 = vmatpush1.msra.mxu0 %v376
    %1125 = vmatprep.subr.mxu0 %v381
    %1126 = vmatpush1.msra.mxu0 %v380
    %1127 = vmatprep.subr.mxu0 %v385
    %1128 = vmatpush1.msra.mxu0 %v384
    %1129 = vmatprep.subr.mxu0 %v389
    %1130 = vmatpush1.msra.mxu0 %v388
    %1131 = vmatprep.mubr.f32.mxu0 %v686
    %1132 = vmatmul.mubr.f32.gmra.mrb[0].mxu0 %v684
    %v1133 = vpop.f32.mrb[0].mxu0
    %v1134 = vadd.f32 %v1063, %v1133
    %v1135 = vpop.f32.mrb[0].mxu0
    %v1136 = vadd.f32 %v1065, %v1135
    %1137 = vdwg.mxu0
    %1138 = vmatprep.subr.mxu0 %v393
    %1139 = vmatpush1.msra.mxu0 %v392
    %1140 = vmatprep.subr.mxu0 %v397
    %1141 = vmatpush1.msra.mxu0 %v396
    %1142 = vmatprep.subr.mxu0 %v401
    %1143 = vmatpush1.msra.mxu0 %v400
    %1144 = vmatprep.subr.mxu0 %v405
    %1145 = vmatpush1.msra.mxu0 %v404
    %1146 = vmatprep.subr.mxu0 %v409
    %1147 = vmatpush1.msra.mxu0 %v408
    %1148 = vmatprep.subr.mxu0 %v413
    %1149 = vmatpush1.msra.mxu0 %v412
    %1150 = vmatprep.subr.mxu0 %v417
    %1151 = vmatpush1.msra.mxu0 %v416
    %1152 = vmatprep.subr.mxu0 %v421
    %1153 = vmatpush1.msra.mxu0 %v420
    %1154 = vmatprep.subr.mxu0 %v425
    %1155 = vmatpush1.msra.mxu0 %v424
    %1156 = vmatprep.subr.mxu0 %v429
    %1157 = vmatpush1.msra.mxu0 %v428
    %1158 = vmatprep.subr.mxu0 %v433
    %1159 = vmatpush1.msra.mxu0 %v432
    %1160 = vmatprep.subr.mxu0 %v437
    %1161 = vmatpush1.msra.mxu0 %v436
    %1162 = vmatprep.subr.mxu0 %v441
    %1163 = vmatpush1.msra.mxu0 %v440
    %1164 = vmatprep.subr.mxu0 %v445
    %1165 = vmatpush1.msra.mxu0 %v444
    %1166 = vmatprep.subr.mxu0 %v449
    %1167 = vmatpush1.msra.mxu0 %v448
    %1168 = vmatprep.subr.mxu0 %v453
    %1169 = vmatpush1.msra.mxu0 %v452
    %1170 = vmatprep.subr.mxu0 %v457
    %1171 = vmatpush1.msra.mxu0 %v456
    %1172 = vmatprep.subr.mxu0 %v461
    %1173 = vmatpush1.msra.mxu0 %v460
    %1174 = vmatprep.subr.mxu0 %v465
    %1175 = vmatpush1.msra.mxu0 %v464
    %1176 = vmatprep.subr.mxu0 %v469
    %1177 = vmatpush1.msra.mxu0 %v468
    %1178 = vmatprep.subr.mxu0 %v473
    %1179 = vmatpush1.msra.mxu0 %v472
    %1180 = vmatprep.subr.mxu0 %v477
    %1181 = vmatpush1.msra.mxu0 %v476
    %1182 = vmatprep.subr.mxu0 %v481
    %1183 = vmatpush1.msra.mxu0 %v480
    %1184 = vmatprep.subr.mxu0 %v485
    %1185 = vmatpush1.msra.mxu0 %v484
    %1186 = vmatprep.subr.mxu0 %v489
    %1187 = vmatpush1.msra.mxu0 %v488
    %1188 = vmatprep.subr.mxu0 %v493
    %1189 = vmatpush1.msra.mxu0 %v492
    %1190 = vmatprep.subr.mxu0 %v497
    %1191 = vmatpush1.msra.mxu0 %v496
    %1192 = vmatprep.subr.mxu0 %v501
    %1193 = vmatpush1.msra.mxu0 %v500
    %1194 = vmatprep.subr.mxu0 %v505
    %1195 = vmatpush1.msra.mxu0 %v504
    %1196 = vmatprep.subr.mxu0 %v509
    %1197 = vmatpush1.msra.mxu0 %v508
    %1198 = vmatprep.subr.mxu0 %v513
    %1199 = vmatpush1.msra.mxu0 %v512
    %1200 = vmatprep.subr.mxu0 %v517
    %1201 = vmatpush1.msra.mxu0 %v516
    %1202 = vmatprep.mubr.f32.mxu0 %v702
    %1203 = vmatmul.mubr.f32.gmra.mrb[0].mxu0 %v694
    %v1204 = vpop.f32.mrb[0].mxu0
    %v1205 = vadd.f32 %v1134, %v1204
    %v1206 = vpop.f32.mrb[0].mxu0
    %v1207 = vadd.f32 %v1136, %v1206
    %1208 = vdwg.mxu0
    %1209 = vmatprep.subr.mxu0 %v521
    %1210 = vmatpush1.msra.mxu0 %v520
    %1211 = vmatprep.subr.mxu0 %v525
    %1212 = vmatpush1.msra.mxu0 %v524
    %1213 = vmatprep.subr.mxu0 %v529
    %1214 = vmatpush1.msra.mxu0 %v528
    %1215 = vmatprep.subr.mxu0 %v533
    %1216 = vmatpush1.msra.mxu0 %v532
    %1217 = vmatprep.subr.mxu0 %v537
    %1218 = vmatpush1.msra.mxu0 %v536
    %1219 = vmatprep.subr.mxu0 %v541
    %1220 = vmatpush1.msra.mxu0 %v540
    %1221 = vmatprep.subr.mxu0 %v545
    %1222 = vmatpush1.msra.mxu0 %v544
    %1223 = vmatprep.subr.mxu0 %v549
    %1224 = vmatpush1.msra.mxu0 %v548
    %1225 = vmatprep.subr.mxu0 %v553
    %1226 = vmatpush1.msra.mxu0 %v552
    %1227 = vmatprep.subr.mxu0 %v557
    %1228 = vmatpush1.msra.mxu0 %v556
    %1229 = vmatprep.subr.mxu0 %v561
    %1230 = vmatpush1.msra.mxu0 %v560
    %1231 = vmatprep.subr.mxu0 %v565
    %1232 = vmatpush1.msra.mxu0 %v564
    %1233 = vmatprep.subr.mxu0 %v569
    %1234 = vmatpush1.msra.mxu0 %v568
    %1235 = vmatprep.subr.mxu0 %v573
    %1236 = vmatpush1.msra.mxu0 %v572
    %1237 = vmatprep.subr.mxu0 %v577
    %1238 = vmatpush1.msra.mxu0 %v576
    %1239 = vmatprep.subr.mxu0 %v581
    %1240 = vmatpush1.msra.mxu0 %v580
    %1241 = vmatprep.subr.mxu0 %v585
    %1242 = vmatpush1.msra.mxu0 %v584
    %1243 = vmatprep.subr.mxu0 %v589
    %1244 = vmatpush1.msra.mxu0 %v588
    %1245 = vmatprep.subr.mxu0 %v593
    %1246 = vmatpush1.msra.mxu0 %v592
    %1247 = vmatprep.subr.mxu0 %v597
    %1248 = vmatpush1.msra.mxu0 %v596
    %1249 = vmatprep.subr.mxu0 %v601
    %1250 = vmatpush1.msra.mxu0 %v600
    %1251 = vmatprep.subr.mxu0 %v605
    %1252 = vmatpush1.msra.mxu0 %v604
    %1253 = vmatprep.subr.mxu0 %v609
    %1254 = vmatpush1.msra.mxu0 %v608
    %1255 = vmatprep.subr.mxu0 %v613
    %1256 = vmatpush1.msra.mxu0 %v612
    %1257 = vmatprep.subr.mxu0 %v617
    %1258 = vmatpush1.msra.mxu0 %v616
    %1259 = vmatprep.subr.mxu0 %v621
    %1260 = vmatpush1.msra.mxu0 %v620
    %1261 = vmatprep.subr.mxu0 %v625
    %1262 = vmatpush1.msra.mxu0 %v624
    %1263 = vmatprep.subr.mxu0 %v629
    %1264 = vmatpush1.msra.mxu0 %v628
    %1265 = vmatprep.subr.mxu0 %v633
    %1266 = vmatpush1.msra.mxu0 %v632
    %1267 = vmatprep.subr.mxu0 %v637
    %1268 = vmatpush1.msra.mxu0 %v636
    %1269 = vmatprep.subr.mxu0 %v641
    %1270 = vmatpush1.msra.mxu0 %v640
    %1271 = vmatprep.subr.mxu0 %v645
    %1272 = vmatpush1.msra.mxu0 %v644
    %1273 = vmatprep.mubr.f32.mxu0 %v703
    %1274 = vmatmul.mubr.f32.gmra.mrb[0].mxu0 %v701
    %v1275 = vpop.f32.mrb[0].mxu0
    %v1276 = vadd.f32 %v1205, %v1275
    %v1277 = vpop.f32.mrb[0].mxu0
    %v1278 = vadd.f32 %v1207, %v1277
    %1279 = vdwg.mxu0
    %v1280 = vmax.f32 %v992, 0.0
    %v1281 = vmax.f32 %v994, 0.0
    %v1282 = vmax.f32 %v1276, 0.0
    %v1283 = vmax.f32 %v1278, 0.0
    %v1284 = vld [vmem:[#allocation8] sm:$0xff]
    %v1285 = vld [vmem:[#allocation8 + $0x8] sm:$0xff]
    %v1286 = vld [vmem:[#allocation8 + $0x10] sm:$0xff]
    %v1287 = vld [vmem:[#allocation8 + $0x18] sm:$0xff]
    %v1288 = vld [vmem:[#allocation8 + $0x20] sm:$0xff]
    %v1289 = vld [vmem:[#allocation8 + $0x28] sm:$0xff]
    %v1290 = vld [vmem:[#allocation8 + $0x30] sm:$0xff]
    %v1291 = vld [vmem:[#allocation8 + $0x38] sm:$0xff]
    %v1292 = vld [vmem:[#allocation8 + $0x40] sm:$0xff]
    %v1293 = vld [vmem:[#allocation8 + $0x48] sm:$0xff]
    %v1294 = vld [vmem:[#allocation8 + $0x50] sm:$0xff]
    %v1295 = vld [vmem:[#allocation8 + $0x58] sm:$0xff]
    %v1296 = vld [vmem:[#allocation8 + $0x60] sm:$0xff]
    %v1297 = vld [vmem:[#allocation8 + $0x68] sm:$0xff]
    %v1298 = vld [vmem:[#allocation8 + $0x70] sm:$0xff]
    %v1299 = vld [vmem:[#allocation8 + $0x78] sm:$0xff]
    %v1300 = vld [vmem:[#allocation8 + $0x80] sm:$0xff]
    %v1301 = vld [vmem:[#allocation8 + $0x88] sm:$0xff]
    %v1302 = vld [vmem:[#allocation8 + $0x90] sm:$0xff]
    %v1303 = vld [vmem:[#allocation8 + $0x98] sm:$0xff]
    %v1304 = vld [vmem:[#allocation8 + $0xa0] sm:$0xff]
    %v1305 = vld [vmem:[#allocation8 + $0xa8] sm:$0xff]
    %v1306 = vld [vmem:[#allocation8 + $0xb0] sm:$0xff]
    %v1307 = vld [vmem:[#allocation8 + $0xb8] sm:$0xff]
    %v1308 = vld [vmem:[#allocation8 + $0xc0] sm:$0xff]
    %v1309 = vld [vmem:[#allocation8 + $0xc8] sm:$0xff]
    %v1310 = vld [vmem:[#allocation8 + $0xd0] sm:$0xff]
    %v1311 = vld [vmem:[#allocation8 + $0xd8] sm:$0xff]
    %v1312 = vld [vmem:[#allocation8 + $0xe0] sm:$0xff]
    %v1313 = vld [vmem:[#allocation8 + $0xe8] sm:$0xff]
    %v1314 = vld [vmem:[#allocation8 + $0xf0] sm:$0xff]
    %v1315 = vld [vmem:[#allocation8 + $0xf8] sm:$0xff]
    %v1316 = vld [vmem:[#allocation8 + $0x100] sm:$0xff]
    %v1317 = vld [vmem:[#allocation8 + $0x108] sm:$0xff]
    %v1318 = vld [vmem:[#allocation8 + $0x110] sm:$0xff]
    %v1319 = vld [vmem:[#allocation8 + $0x118] sm:$0xff]
    %v1320 = vld [vmem:[#allocation8 + $0x120] sm:$0xff]
    %v1321 = vld [vmem:[#allocation8 + $0x128] sm:$0xff]
    %v1322 = vld [vmem:[#allocation8 + $0x130] sm:$0xff]
    %v1323 = vld [vmem:[#allocation8 + $0x138] sm:$0xff]
    %v1324 = vld [vmem:[#allocation8 + $0x140] sm:$0xff]
    %v1325 = vld [vmem:[#allocation8 + $0x148] sm:$0xff]
    %v1326 = vld [vmem:[#allocation8 + $0x150] sm:$0xff]
    %v1327 = vld [vmem:[#allocation8 + $0x158] sm:$0xff]
    %v1328 = vld [vmem:[#allocation8 + $0x160] sm:$0xff]
    %v1329 = vld [vmem:[#allocation8 + $0x168] sm:$0xff]
    %v1330 = vld [vmem:[#allocation8 + $0x170] sm:$0xff]
    %v1331 = vld [vmem:[#allocation8 + $0x178] sm:$0xff]
    %v1332 = vld [vmem:[#allocation8 + $0x180] sm:$0xff]
    %v1333 = vld [vmem:[#allocation8 + $0x188] sm:$0xff]
    %v1334 = vld [vmem:[#allocation8 + $0x190] sm:$0xff]
    %v1335 = vld [vmem:[#allocation8 + $0x198] sm:$0xff]
    %v1336 = vld [vmem:[#allocation8 + $0x1a0] sm:$0xff]
    %v1337 = vld [vmem:[#allocation8 + $0x1a8] sm:$0xff]
    %v1338 = vld [vmem:[#allocation8 + $0x1b0] sm:$0xff]
    %v1339 = vld [vmem:[#allocation8 + $0x1b8] sm:$0xff]
    %v1340 = vld [vmem:[#allocation8 + $0x1c0] sm:$0xff]
    %v1341 = vld [vmem:[#allocation8 + $0x1c8] sm:$0xff]
    %v1342 = vld [vmem:[#allocation8 + $0x1d0] sm:$0xff]
    %v1343 = vld [vmem:[#allocation8 + $0x1d8] sm:$0xff]
    %v1344 = vld [vmem:[#allocation8 + $0x1e0] sm:$0xff]
    %v1345 = vld [vmem:[#allocation8 + $0x1e8] sm:$0xff]
    %v1346 = vld [vmem:[#allocation8 + $0x1f0] sm:$0xff]
    %v1347 = vld [vmem:[#allocation8 + $0x1f8] sm:$0xff]
    %v1348 = vld [vmem:[#allocation8 + $0x200] sm:$0xff]
    %v1349 = vld [vmem:[#allocation8 + $0x208] sm:$0xff]
    %v1350 = vld [vmem:[#allocation8 + $0x210] sm:$0xff]
    %v1351 = vld [vmem:[#allocation8 + $0x218] sm:$0xff]
    %v1352 = vld [vmem:[#allocation8 + $0x220] sm:$0xff]
    %v1353 = vld [vmem:[#allocation8 + $0x228] sm:$0xff]
    %v1354 = vld [vmem:[#allocation8 + $0x230] sm:$0xff]
    %v1355 = vld [vmem:[#allocation8 + $0x238] sm:$0xff]
    %v1356 = vld [vmem:[#allocation8 + $0x240] sm:$0xff]
    %v1357 = vld [vmem:[#allocation8 + $0x248] sm:$0xff]
    %v1358 = vld [vmem:[#allocation8 + $0x250] sm:$0xff]
    %v1359 = vld [vmem:[#allocation8 + $0x258] sm:$0xff]
    %v1360 = vld [vmem:[#allocation8 + $0x260] sm:$0xff]
    %v1361 = vld [vmem:[#allocation8 + $0x268] sm:$0xff]
    %v1362 = vld [vmem:[#allocation8 + $0x270] sm:$0xff]
    %v1363 = vld [vmem:[#allocation8 + $0x278] sm:$0xff]
    %v1364 = vld [vmem:[#allocation8 + $0x280] sm:$0xff]
    %v1365 = vld [vmem:[#allocation8 + $0x288] sm:$0xff]
    %v1366 = vld [vmem:[#allocation8 + $0x290] sm:$0xff]
    %v1367 = vld [vmem:[#allocation8 + $0x298] sm:$0xff]
    %v1368 = vld [vmem:[#allocation8 + $0x2a0] sm:$0xff]
    %v1369 = vld [vmem:[#allocation8 + $0x2a8] sm:$0xff]
    %v1370 = vld [vmem:[#allocation8 + $0x2b0] sm:$0xff]
    %v1371 = vld [vmem:[#allocation8 + $0x2b8] sm:$0xff]
    %v1372 = vld [vmem:[#allocation8 + $0x2c0] sm:$0xff]
    %v1373 = vld [vmem:[#allocation8 + $0x2c8] sm:$0xff]
    %v1374 = vld [vmem:[#allocation8 + $0x2d0] sm:$0xff]
    %v1375 = vld [vmem:[#allocation8 + $0x2d8] sm:$0xff]
    %v1376 = vld [vmem:[#allocation8 + $0x2e0] sm:$0xff]
    %v1377 = vld [vmem:[#allocation8 + $0x2e8] sm:$0xff]
    %v1378 = vld [vmem:[#allocation8 + $0x2f0] sm:$0xff]
    %v1379 = vld [vmem:[#allocation8 + $0x2f8] sm:$0xff]
    %v1380 = vld [vmem:[#allocation8 + $0x300] sm:$0xff]
    %v1381 = vld [vmem:[#allocation8 + $0x308] sm:$0xff]
    %v1382 = vld [vmem:[#allocation8 + $0x310] sm:$0xff]
    %v1383 = vld [vmem:[#allocation8 + $0x318] sm:$0xff]
    %v1384 = vld [vmem:[#allocation8 + $0x320] sm:$0xff]
    %v1385 = vld [vmem:[#allocation8 + $0x328] sm:$0xff]
    %v1386 = vld [vmem:[#allocation8 + $0x330] sm:$0xff]
    %v1387 = vld [vmem:[#allocation8 + $0x338] sm:$0xff]
    %v1388 = vld [vmem:[#allocation8 + $0x340] sm:$0xff]
    %v1389 = vld [vmem:[#allocation8 + $0x348] sm:$0xff]
    %v1390 = vld [vmem:[#allocation8 + $0x350] sm:$0xff]
    %v1391 = vld [vmem:[#allocation8 + $0x358] sm:$0xff]
    %v1392 = vld [vmem:[#allocation8 + $0x360] sm:$0xff]
    %v1393 = vld [vmem:[#allocation8 + $0x368] sm:$0xff]
    %v1394 = vld [vmem:[#allocation8 + $0x370] sm:$0xff]
    %v1395 = vld [vmem:[#allocation8 + $0x378] sm:$0xff]
    %v1396 = vld [vmem:[#allocation8 + $0x380] sm:$0xff]
    %v1397 = vld [vmem:[#allocation8 + $0x388] sm:$0xff]
    %v1398 = vld [vmem:[#allocation8 + $0x390] sm:$0xff]
    %v1399 = vld [vmem:[#allocation8 + $0x398] sm:$0xff]
    %v1400 = vld [vmem:[#allocation8 + $0x3a0] sm:$0xff]
    %v1401 = vld [vmem:[#allocation8 + $0x3a8] sm:$0xff]
    %v1402 = vld [vmem:[#allocation8 + $0x3b0] sm:$0xff]
    %v1403 = vld [vmem:[#allocation8 + $0x3b8] sm:$0xff]
    %v1404 = vld [vmem:[#allocation8 + $0x3c0] sm:$0xff]
    %v1405 = vld [vmem:[#allocation8 + $0x3c8] sm:$0xff]
    %v1406 = vld [vmem:[#allocation8 + $0x3d0] sm:$0xff]
    %v1407 = vld [vmem:[#allocation8 + $0x3d8] sm:$0xff]
    %v1408 = vld [vmem:[#allocation8 + $0x3e0] sm:$0xff]
    %v1409 = vld [vmem:[#allocation8 + $0x3e8] sm:$0xff]
    %v1410 = vld [vmem:[#allocation8 + $0x3f0] sm:$0xff]
    %v1411 = vld [vmem:[#allocation8 + $0x3f8] sm:$0xff]
    %v1412 = vld [vmem:[#allocation10] sm:$0x3]
    %v1414 = vlaneseq
    %v1415 = vshrl.u32 %v1414, 7
    %v1416 = vsub.s32 0, %v1415
    %v1417 = vrot.slane %v1412, %v1416
    %v1418 = vlaneseq
    %v1419 = vshrl.u32 %v1418, 7
    %v1420 = vsub.s32 1, %v1419
    %v1421 = vrot.slane %v1412, %v1420
    %1424 = vmatprep.subr.mxu0 %v1285
    %1425 = vmatpush1.msra.mxu0 %v1284
    %1426 = vmatprep.subr.mxu0 %v1287
    %1427 = vmatpush1.msra.mxu0 %v1286
    %1428 = vmatprep.subr.mxu0 %v1289
    %1429 = vmatpush1.msra.mxu0 %v1288
    %1430 = vmatprep.subr.mxu0 %v1291
    %1431 = vmatpush1.msra.mxu0 %v1290
    %1432 = vmatprep.subr.mxu0 %v1293
    %1433 = vmatpush1.msra.mxu0 %v1292
    %1434 = vmatprep.subr.mxu0 %v1295
    %1435 = vmatpush1.msra.mxu0 %v1294
    %1436 = vmatprep.subr.mxu0 %v1297
    %1437 = vmatpush1.msra.mxu0 %v1296
    %1438 = vmatprep.subr.mxu0 %v1299
    %1439 = vmatpush1.msra.mxu0 %v1298
    %1440 = vmatprep.subr.mxu0 %v1301
    %1441 = vmatpush1.msra.mxu0 %v1300
    %1442 = vmatprep.subr.mxu0 %v1303
    %1443 = vmatpush1.msra.mxu0 %v1302
    %1444 = vmatprep.subr.mxu0 %v1305
    %1445 = vmatpush1.msra.mxu0 %v1304
    %1446 = vmatprep.subr.mxu0 %v1307
    %1447 = vmatpush1.msra.mxu0 %v1306
    %1448 = vmatprep.subr.mxu0 %v1309
    %1449 = vmatpush1.msra.mxu0 %v1308
    %1450 = vmatprep.subr.mxu0 %v1311
    %1451 = vmatpush1.msra.mxu0 %v1310
    %1452 = vmatprep.subr.mxu0 %v1313
    %1453 = vmatpush1.msra.mxu0 %v1312
    %1454 = vmatprep.subr.mxu0 %v1315
    %1455 = vmatpush1.msra.mxu0 %v1314
    %1456 = vmatprep.subr.mxu0 %v1317
    %1457 = vmatpush1.msra.mxu0 %v1316
    %1458 = vmatprep.subr.mxu0 %v1319
    %1459 = vmatpush1.msra.mxu0 %v1318
    %1460 = vmatprep.subr.mxu0 %v1321
    %1461 = vmatpush1.msra.mxu0 %v1320
    %1462 = vmatprep.subr.mxu0 %v1323
    %1463 = vmatpush1.msra.mxu0 %v1322
    %1464 = vmatprep.subr.mxu0 %v1325
    %1465 = vmatpush1.msra.mxu0 %v1324
    %1466 = vmatprep.subr.mxu0 %v1327
    %1467 = vmatpush1.msra.mxu0 %v1326
    %1468 = vmatprep.subr.mxu0 %v1329
    %1469 = vmatpush1.msra.mxu0 %v1328
    %1470 = vmatprep.subr.mxu0 %v1331
    %1471 = vmatpush1.msra.mxu0 %v1330
    %1472 = vmatprep.subr.mxu0 %v1333
    %1473 = vmatpush1.msra.mxu0 %v1332
    %1474 = vmatprep.subr.mxu0 %v1335
    %1475 = vmatpush1.msra.mxu0 %v1334
    %1476 = vmatprep.subr.mxu0 %v1337
    %1477 = vmatpush1.msra.mxu0 %v1336
    %1478 = vmatprep.subr.mxu0 %v1339
    %1479 = vmatpush1.msra.mxu0 %v1338
    %1480 = vmatprep.subr.mxu0 %v1341
    %1481 = vmatpush1.msra.mxu0 %v1340
    %1482 = vmatprep.subr.mxu0 %v1343
    %1483 = vmatpush1.msra.mxu0 %v1342
    %1484 = vmatprep.subr.mxu0 %v1345
    %1485 = vmatpush1.msra.mxu0 %v1344
    %1486 = vmatprep.subr.mxu0 %v1347
    %1487 = vmatpush1.msra.mxu0 %v1346
    %1488 = vmatprep.mubr.f32.mxu0 %v1281
    %1489 = vmatmul.mubr.f32.gmra.mrb[0].mxu0 %v1280
    %v1490 = vpop.f32.mrb[0].mxu0
    %v1491 = vadd.f32 %v1417, %v1490
    %v1492 = vpop.f32.mrb[0].mxu0
    %v1493 = vadd.f32 %v1421, %v1492
    %1494 = vdwg.mxu0
    %1495 = vmatprep.subr.mxu0 %v1349
    %1496 = vmatpush1.msra.mxu0 %v1348
    %1497 = vmatprep.subr.mxu0 %v1351
    %1498 = vmatpush1.msra.mxu0 %v1350
    %1499 = vmatprep.subr.mxu0 %v1353
    %1500 = vmatpush1.msra.mxu0 %v1352
    %1501 = vmatprep.subr.mxu0 %v1355
    %1502 = vmatpush1.msra.mxu0 %v1354
    %1503 = vmatprep.subr.mxu0 %v1357
    %1504 = vmatpush1.msra.mxu0 %v1356
    %1505 = vmatprep.subr.mxu0 %v1359
    %1506 = vmatpush1.msra.mxu0 %v1358
    %1507 = vmatprep.subr.mxu0 %v1361
    %1508 = vmatpush1.msra.mxu0 %v1360
    %1509 = vmatprep.subr.mxu0 %v1363
    %1510 = vmatpush1.msra.mxu0 %v1362
    %1511 = vmatprep.subr.mxu0 %v1365
    %1512 = vmatpush1.msra.mxu0 %v1364
    %1513 = vmatprep.subr.mxu0 %v1367
    %1514 = vmatpush1.msra.mxu0 %v1366
    %1515 = vmatprep.subr.mxu0 %v1369
    %1516 = vmatpush1.msra.mxu0 %v1368
    %1517 = vmatprep.subr.mxu0 %v1371
    %1518 = vmatpush1.msra.mxu0 %v1370
    %1519 = vmatprep.subr.mxu0 %v1373
    %1520 = vmatpush1.msra.mxu0 %v1372
    %1521 = vmatprep.subr.mxu0 %v1375
    %1522 = vmatpush1.msra.mxu0 %v1374
    %1523 = vmatprep.subr.mxu0 %v1377
    %1524 = vmatpush1.msra.mxu0 %v1376
    %1525 = vmatprep.subr.mxu0 %v1379
    %1526 = vmatpush1.msra.mxu0 %v1378
    %1527 = vmatprep.subr.mxu0 %v1381
    %1528 = vmatpush1.msra.mxu0 %v1380
    %1529 = vmatprep.subr.mxu0 %v1383
    %1530 = vmatpush1.msra.mxu0 %v1382
    %1531 = vmatprep.subr.mxu0 %v1385
    %1532 = vmatpush1.msra.mxu0 %v1384
    %1533 = vmatprep.subr.mxu0 %v1387
    %1534 = vmatpush1.msra.mxu0 %v1386
    %1535 = vmatprep.subr.mxu0 %v1389
    %1536 = vmatpush1.msra.mxu0 %v1388
    %1537 = vmatprep.subr.mxu0 %v1391
    %1538 = vmatpush1.msra.mxu0 %v1390
    %1539 = vmatprep.subr.mxu0 %v1393
    %1540 = vmatpush1.msra.mxu0 %v1392
    %1541 = vmatprep.subr.mxu0 %v1395
    %1542 = vmatpush1.msra.mxu0 %v1394
    %1543 = vmatprep.subr.mxu0 %v1397
    %1544 = vmatpush1.msra.mxu0 %v1396
    %1545 = vmatprep.subr.mxu0 %v1399
    %1546 = vmatpush1.msra.mxu0 %v1398
    %1547 = vmatprep.subr.mxu0 %v1401
    %1548 = vmatpush1.msra.mxu0 %v1400
    %1549 = vmatprep.subr.mxu0 %v1403
    %1550 = vmatpush1.msra.mxu0 %v1402
    %1551 = vmatprep.subr.mxu0 %v1405
    %1552 = vmatpush1.msra.mxu0 %v1404
    %1553 = vmatprep.subr.mxu0 %v1407
    %1554 = vmatpush1.msra.mxu0 %v1406
    %1555 = vmatprep.subr.mxu0 %v1409
    %1556 = vmatpush1.msra.mxu0 %v1408
    %1557 = vmatprep.subr.mxu0 %v1411
    %1558 = vmatpush1.msra.mxu0 %v1410
    %1559 = vmatprep.mubr.f32.mxu0 %v1283
    %1560 = vmatmul.mubr.f32.gmra.mrb[0].mxu0 %v1282
    %v1561 = vpop.f32.mrb[0].mxu0
    %v1562 = vadd.f32 %v1491, %v1561
    %v1563 = vpop.f32.mrb[0].mxu0
    %v1564 = vadd.f32 %v1493, %v1563
    %1565 = vdwg.mxu0
    %v1566 = vmax.f32 %v1562, 0.0
    %v1567 = vmax.f32 %v1564, 0.0
    %v1568 = vld [vmem:[#allocation11] sm:$0xff]
    %v1569 = vld [vmem:[#allocation11 + $0x8] sm:$0xff]
    %v1570 = vld [vmem:[#allocation11 + $0x10] sm:$0xff]
    %v1571 = vld [vmem:[#allocation11 + $0x18] sm:$0xff]
    %v1572 = vld [vmem:[#allocation11 + $0x20] sm:$0xff]
    %v1573 = vld [vmem:[#allocation11 + $0x28] sm:$0xff]
    %v1574 = vld [vmem:[#allocation11 + $0x30] sm:$0xff]
    %v1575 = vld [vmem:[#allocation11 + $0x38] sm:$0xff]
    %v1576 = vld [vmem:[#allocation11 + $0x40] sm:$0xff]
    %v1577 = vld [vmem:[#allocation11 + $0x48] sm:$0xff]
    %v1578 = vld [vmem:[#allocation11 + $0x50] sm:$0xff]
    %v1579 = vld [vmem:[#allocation11 + $0x58] sm:$0xff]
    %v1580 = vld [vmem:[#allocation11 + $0x60] sm:$0xff]
    %v1581 = vld [vmem:[#allocation11 + $0x68] sm:$0xff]
    %v1582 = vld [vmem:[#allocation11 + $0x70] sm:$0xff]
    %v1583 = vld [vmem:[#allocation11 + $0x78] sm:$0xff]
    %v1584 = vld [vmem:[#allocation11 + $0x80] sm:$0xff]
    %v1585 = vld [vmem:[#allocation11 + $0x88] sm:$0xff]
    %v1586 = vld [vmem:[#allocation11 + $0x90] sm:$0xff]
    %v1587 = vld [vmem:[#allocation11 + $0x98] sm:$0xff]
    %v1588 = vld [vmem:[#allocation11 + $0xa0] sm:$0xff]
    %v1589 = vld [vmem:[#allocation11 + $0xa8] sm:$0xff]
    %v1590 = vld [vmem:[#allocation11 + $0xb0] sm:$0xff]
    %v1591 = vld [vmem:[#allocation11 + $0xb8] sm:$0xff]
    %v1592 = vld [vmem:[#allocation11 + $0xc0] sm:$0xff]
    %v1593 = vld [vmem:[#allocation11 + $0xc8] sm:$0xff]
    %v1594 = vld [vmem:[#allocation11 + $0xd0] sm:$0xff]
    %v1595 = vld [vmem:[#allocation11 + $0xd8] sm:$0xff]
    %v1596 = vld [vmem:[#allocation11 + $0xe0] sm:$0xff]
    %v1597 = vld [vmem:[#allocation11 + $0xe8] sm:$0xff]
    %v1598 = vld [vmem:[#allocation11 + $0xf0] sm:$0xff]
    %v1599 = vld [vmem:[#allocation11 + $0xf8] sm:$0xff]
    %v1600 = vld [vmem:[#allocation11 + $0x100] sm:$0xff]
    %v1601 = vld [vmem:[#allocation11 + $0x108] sm:$0xff]
    %v1602 = vld [vmem:[#allocation11 + $0x110] sm:$0xff]
    %v1603 = vld [vmem:[#allocation11 + $0x118] sm:$0xff]
    %v1604 = vld [vmem:[#allocation11 + $0x120] sm:$0xff]
    %v1605 = vld [vmem:[#allocation11 + $0x128] sm:$0xff]
    %v1606 = vld [vmem:[#allocation11 + $0x130] sm:$0xff]
    %v1607 = vld [vmem:[#allocation11 + $0x138] sm:$0xff]
    %v1608 = vld [vmem:[#allocation11 + $0x140] sm:$0xff]
    %v1609 = vld [vmem:[#allocation11 + $0x148] sm:$0xff]
    %v1610 = vld [vmem:[#allocation11 + $0x150] sm:$0xff]
    %v1611 = vld [vmem:[#allocation11 + $0x158] sm:$0xff]
    %v1612 = vld [vmem:[#allocation11 + $0x160] sm:$0xff]
    %v1613 = vld [vmem:[#allocation11 + $0x168] sm:$0xff]
    %v1614 = vld [vmem:[#allocation11 + $0x170] sm:$0xff]
    %v1615 = vld [vmem:[#allocation11 + $0x178] sm:$0xff]
    %v1616 = vld [vmem:[#allocation11 + $0x180] sm:$0xff]
    %v1617 = vld [vmem:[#allocation11 + $0x188] sm:$0xff]
    %v1618 = vld [vmem:[#allocation11 + $0x190] sm:$0xff]
    %v1619 = vld [vmem:[#allocation11 + $0x198] sm:$0xff]
    %v1620 = vld [vmem:[#allocation11 + $0x1a0] sm:$0xff]
    %v1621 = vld [vmem:[#allocation11 + $0x1a8] sm:$0xff]
    %v1622 = vld [vmem:[#allocation11 + $0x1b0] sm:$0xff]
    %v1623 = vld [vmem:[#allocation11 + $0x1b8] sm:$0xff]
    %v1624 = vld [vmem:[#allocation11 + $0x1c0] sm:$0xff]
    %v1625 = vld [vmem:[#allocation11 + $0x1c8] sm:$0xff]
    %v1626 = vld [vmem:[#allocation11 + $0x1d0] sm:$0xff]
    %v1627 = vld [vmem:[#allocation11 + $0x1d8] sm:$0xff]
    %v1628 = vld [vmem:[#allocation11 + $0x1e0] sm:$0xff]
    %v1629 = vld [vmem:[#allocation11 + $0x1e8] sm:$0xff]
    %v1630 = vld [vmem:[#allocation11 + $0x1f0] sm:$0xff]
    %v1631 = vld [vmem:[#allocation11 + $0x1f8] sm:$0xff]
    %v1632 = vld [vmem:[#allocation13] sm:$0x3]
    %v1634 = vlaneseq
    %v1635 = vshrl.u32 %v1634, 7
    %v1636 = vsub.s32 0, %v1635
    %v1637 = vrot.slane %v1632, %v1636
    %v1638 = vlaneseq
    %v1639 = vshrl.u32 %v1638, 7
    %v1640 = vsub.s32 1, %v1639
    %v1641 = vrot.slane %v1632, %v1640
    %1644 = vmatprep.subr.mxu0 %v1569
    %1645 = vmatpush1.msra.mxu0 %v1568
    %1646 = vmatprep.subr.mxu0 %v1571
    %1647 = vmatpush1.msra.mxu0 %v1570
    %1648 = vmatprep.subr.mxu0 %v1573
    %1649 = vmatpush1.msra.mxu0 %v1572
    %1650 = vmatprep.subr.mxu0 %v1575
    %1651 = vmatpush1.msra.mxu0 %v1574
    %1652 = vmatprep.subr.mxu0 %v1577
    %1653 = vmatpush1.msra.mxu0 %v1576
    %1654 = vmatprep.subr.mxu0 %v1579
    %1655 = vmatpush1.msra.mxu0 %v1578
    %1656 = vmatprep.subr.mxu0 %v1581
    %1657 = vmatpush1.msra.mxu0 %v1580
    %1658 = vmatprep.subr.mxu0 %v1583
    %1659 = vmatpush1.msra.mxu0 %v1582
    %1660 = vmatprep.subr.mxu0 %v1585
    %1661 = vmatpush1.msra.mxu0 %v1584
    %1662 = vmatprep.subr.mxu0 %v1587
    %1663 = vmatpush1.msra.mxu0 %v1586
    %1664 = vmatprep.subr.mxu0 %v1589
    %1665 = vmatpush1.msra.mxu0 %v1588
    %1666 = vmatprep.subr.mxu0 %v1591
    %1667 = vmatpush1.msra.mxu0 %v1590
    %1668 = vmatprep.subr.mxu0 %v1593
    %1669 = vmatpush1.msra.mxu0 %v1592
    %1670 = vmatprep.subr.mxu0 %v1595
    %1671 = vmatpush1.msra.mxu0 %v1594
    %1672 = vmatprep.subr.mxu0 %v1597
    %1673 = vmatpush1.msra.mxu0 %v1596
    %1674 = vmatprep.subr.mxu0 %v1599
    %1675 = vmatpush1.msra.mxu0 %v1598
    %1676 = vmatprep.subr.mxu0 %v1601
    %1677 = vmatpush1.msra.mxu0 %v1600
    %1678 = vmatprep.subr.mxu0 %v1603
    %1679 = vmatpush1.msra.mxu0 %v1602
    %1680 = vmatprep.subr.mxu0 %v1605
    %1681 = vmatpush1.msra.mxu0 %v1604
    %1682 = vmatprep.subr.mxu0 %v1607
    %1683 = vmatpush1.msra.mxu0 %v1606
    %1684 = vmatprep.subr.mxu0 %v1609
    %1685 = vmatpush1.msra.mxu0 %v1608
    %1686 = vmatprep.subr.mxu0 %v1611
    %1687 = vmatpush1.msra.mxu0 %v1610
    %1688 = vmatprep.subr.mxu0 %v1613
    %1689 = vmatpush1.msra.mxu0 %v1612
    %1690 = vmatprep.subr.mxu0 %v1615
    %1691 = vmatpush1.msra.mxu0 %v1614
    %1692 = vmatprep.subr.mxu0 %v1617
    %1693 = vmatpush1.msra.mxu0 %v1616
    %1694 = vmatprep.subr.mxu0 %v1619
    %1695 = vmatpush1.msra.mxu0 %v1618
    %1696 = vmatprep.subr.mxu0 %v1621
    %1697 = vmatpush1.msra.mxu0 %v1620
    %1698 = vmatprep.subr.mxu0 %v1623
    %1699 = vmatpush1.msra.mxu0 %v1622
    %1700 = vmatprep.subr.mxu0 %v1625
    %1701 = vmatpush1.msra.mxu0 %v1624
    %1702 = vmatprep.subr.mxu0 %v1627
    %1703 = vmatpush1.msra.mxu0 %v1626
    %1704 = vmatprep.subr.mxu0 %v1629
    %1705 = vmatpush1.msra.mxu0 %v1628
    %1706 = vmatprep.subr.mxu0 %v1631
    %1707 = vmatpush1.msra.mxu0 %v1630
    %1708 = vmatprep.mubr.f32.mxu0 %v1567
    %1709 = vmatmul.mubr.f32.gmra.mrb[0].mxu0 %v1566
    %v1710 = vpop.f32.mrb[0].mxu0
    %v1711 = vadd.f32 %v1637, %v1710
    %v1712 = vpop.f32.mrb[0].mxu0
    %v1713 = vadd.f32 %v1641, %v1712
    %1714 = vdwg.mxu0
    %v1715 = vmax.f32 %v1711, 0.0
    %v1716 = vmax.f32 %v1713, 0.0
    %v1717 = vld [vmem:[%s7] sm:$0xff]
    %v1718 = vld [vmem:[%s7 + $0x8] sm:$0xff]
    %v1719 = vld [vmem:[%s7 + $0x10] sm:$0xff]
    %v1720 = vld [vmem:[%s7 + $0x18] sm:$0xff]
    %v1721 = vld [vmem:[%s7 + $0x20] sm:$0xff]
    %v1722 = vld [vmem:[%s7 + $0x28] sm:$0xff]
    %v1723 = vld [vmem:[%s7 + $0x30] sm:$0xff]
    %v1724 = vld [vmem:[%s7 + $0x38] sm:$0xff]
    %v1725 = vld [vmem:[%s7 + $0x40] sm:$0xff]
    %v1726 = vld [vmem:[%s7 + $0x48] sm:$0xff]
    %v1727 = vld [vmem:[%s7 + $0x50] sm:$0xff]
    %v1728 = vld [vmem:[%s7 + $0x58] sm:$0xff]
    %v1729 = vld [vmem:[%s7 + $0x60] sm:$0xff]
    %v1730 = vld [vmem:[%s7 + $0x68] sm:$0xff]
    %v1731 = vld [vmem:[%s7 + $0x70] sm:$0xff]
    %v1732 = vld [vmem:[%s7 + $0x78] sm:$0xff]
    %v1733 = vld [vmem:[%s7 + $0x80] sm:$0xff]
    %v1734 = vld [vmem:[%s7 + $0x88] sm:$0xff]
    %v1735 = vld [vmem:[%s7 + $0x90] sm:$0xff]
    %v1736 = vld [vmem:[%s7 + $0x98] sm:$0xff]
    %v1737 = vld [vmem:[%s7 + $0xa0] sm:$0xff]
    %v1738 = vld [vmem:[%s7 + $0xa8] sm:$0xff]
    %v1739 = vld [vmem:[%s7 + $0xb0] sm:$0xff]
    %v1740 = vld [vmem:[%s7 + $0xb8] sm:$0xff]
    %v1741 = vld [vmem:[%s7 + $0xc0] sm:$0xff]
    %v1742 = vld [vmem:[%s7 + $0xc8] sm:$0xff]
    %v1743 = vld [vmem:[%s7 + $0xd0] sm:$0xff]
    %v1744 = vld [vmem:[%s7 + $0xd8] sm:$0xff]
    %v1745 = vld [vmem:[%s7 + $0xe0] sm:$0xff]
    %v1746 = vld [vmem:[%s7 + $0xe8] sm:$0xff]
    %v1747 = vld [vmem:[%s7 + $0xf0] sm:$0xff]
    %v1748 = vld [vmem:[%s7 + $0xf8] sm:$0xff]
    %v1749 = vld [vmem:[#allocation14] sm:$0x1]
    %v1751 = vlaneseq
    %v1752 = vshrl.u32 %v1751, 7
    %v1753 = vsub.s32 0, %v1752
    %v1754 = vrot.slane %v1749, %v1753
    %1756 = vmatprep.subr.mxu0 0.0
    %1757 = vmatpush1.msra.mxu0 %v1717
    %1758 = vmatprep.subr.mxu0 0.0
    %1759 = vmatpush1.msra.mxu0 %v1718
    %1760 = vmatprep.subr.mxu0 0.0
    %1761 = vmatpush1.msra.mxu0 %v1719
    %1762 = vmatprep.subr.mxu0 0.0
    %1763 = vmatpush1.msra.mxu0 %v1720
    %1764 = vmatprep.subr.mxu0 0.0
    %1765 = vmatpush1.msra.mxu0 %v1721
    %1766 = vmatprep.subr.mxu0 0.0
    %1767 = vmatpush1.msra.mxu0 %v1722
    %1768 = vmatprep.subr.mxu0 0.0
    %1769 = vmatpush1.msra.mxu0 %v1723
    %1770 = vmatprep.subr.mxu0 0.0
    %1771 = vmatpush1.msra.mxu0 %v1724
    %1772 = vmatprep.subr.mxu0 0.0
    %1773 = vmatpush1.msra.mxu0 %v1725
    %1774 = vmatprep.subr.mxu0 0.0
    %1775 = vmatpush1.msra.mxu0 %v1726
    %1776 = vmatprep.subr.mxu0 0.0
    %1777 = vmatpush1.msra.mxu0 %v1727
    %1778 = vmatprep.subr.mxu0 0.0
    %1779 = vmatpush1.msra.mxu0 %v1728
    %1780 = vmatprep.subr.mxu0 0.0
    %1781 = vmatpush1.msra.mxu0 %v1729
    %1782 = vmatprep.subr.mxu0 0.0
    %1783 = vmatpush1.msra.mxu0 %v1730
    %1784 = vmatprep.subr.mxu0 0.0
    %1785 = vmatpush1.msra.mxu0 %v1731
    %1786 = vmatprep.subr.mxu0 0.0
    %1787 = vmatpush1.msra.mxu0 %v1732
    %1788 = vmatprep.subr.mxu0 0.0
    %1789 = vmatpush1.msra.mxu0 %v1733
    %1790 = vmatprep.subr.mxu0 0.0
    %1791 = vmatpush1.msra.mxu0 %v1734
    %1792 = vmatprep.subr.mxu0 0.0
    %1793 = vmatpush1.msra.mxu0 %v1735
    %1794 = vmatprep.subr.mxu0 0.0
    %1795 = vmatpush1.msra.mxu0 %v1736
    %1796 = vmatprep.subr.mxu0 0.0
    %1797 = vmatpush1.msra.mxu0 %v1737
    %1798 = vmatprep.subr.mxu0 0.0
    %1799 = vmatpush1.msra.mxu0 %v1738
    %1800 = vmatprep.subr.mxu0 0.0
    %1801 = vmatpush1.msra.mxu0 %v1739
    %1802 = vmatprep.subr.mxu0 0.0
    %1803 = vmatpush1.msra.mxu0 %v1740
    %1804 = vmatprep.subr.mxu0 0.0
    %1805 = vmatpush1.msra.mxu0 %v1741
    %1806 = vmatprep.subr.mxu0 0.0
    %1807 = vmatpush1.msra.mxu0 %v1742
    %1808 = vmatprep.subr.mxu0 0.0
    %1809 = vmatpush1.msra.mxu0 %v1743
    %1810 = vmatprep.subr.mxu0 0.0
    %1811 = vmatpush1.msra.mxu0 %v1744
    %1812 = vmatprep.subr.mxu0 0.0
    %1813 = vmatpush1.msra.mxu0 %v1745
    %1814 = vmatprep.subr.mxu0 0.0
    %1815 = vmatpush1.msra.mxu0 %v1746
    %1816 = vmatprep.subr.mxu0 0.0
    %1817 = vmatpush1.msra.mxu0 %v1747
    %1818 = vmatprep.subr.mxu0 0.0
    %1819 = vmatpush1.msra.mxu0 %v1748
    %1820 = vmatprep.mubr.f32.mxu0 %v1716
    %1821 = vmatmul.mubr.f32.gmra.mrb[0].mxu0 %v1715
    %v1822 = vpop.f32.mrb[0].mxu0
    %v1823 = vadd.f32 %v1754, %v1822
    %v1824 = vpop.f32.mrb[0].mxu0
    %1825 = vdwg.mxu0
    %v1826 = vtanh.pop %v1823
    %vm1827 = vcmask 254976
    %1828 = vst.msk [vmem:[#allocation16] sm:$0x3] %vm1827, %v1826
    // Predicated region
    $region70: #{tpu_custom_call.1} parent=1 // pred_check
      _
    $region71: #{tpu_custom_call.1} parent=1 // pred_check_branch
      %1830 = sbr.rel (0) target = $region73
    $region72: #{tpu_custom_call.1} parent=1 // pred_region
      %s1832 = ssub.s32 32, 32
      %1833 = vsyncadd [#allocation4], %s1832
      %s1835 = sshll.u32 [#allocation16], 4
      %s1836 = int_to_ptr.vmem [resolvable:$true] %s1835
      %1838 = dma.vmem_to_hbm [thread:$0]  %s1836, 32, %s9, [#allocation4]
    $region73: #{tpu_custom_call.1} parent=1 // pred_fallthru
      _
    // Predicated region
    $region74: #{tpu_custom_call.1} parent=1 // pred_check
      _
    $region75: #{tpu_custom_call.1} parent=1 // pred_check_branch
      %1840 = sbr.rel (0) target = $region77
    $region76: #{tpu_custom_call.1} parent=1 // pred_region
      %1841 = dma.done [#allocation4], 32
    $region77: #{tpu_custom_call.1} parent=1 // pred_fallthru
      _
    %1842 = vsyncpa [#allocation3], 1
    %1843 = vsyncpa [#allocation6], 1
    %1844 = vsyncpa [#allocation9], 1
    %1845 = vsyncpa [#allocation12], 1
    %1846 = vsyncpa [#allocation15], 1
    %1847 = vsyncpa [#allocation4], 1

</llo_original>
